<compile_context>
chip_gen: v5e
topology: v5e:2x2
jax: 0.10.0
libtpu: 0.0.40
codegen_flags: <defaults>
</compile_context>

<pallas_src>
import jax
import jax.numpy as jnp
from jax.experimental import pallas as pl
from jax.experimental.pallas import tpu as pltpu

BN_EPS = 1e-5          # PyTorch BatchNorm2d default eps
LANE = 128             # TPU lane width: Cout is padded to a multiple of this


def _round_up(v, m):
  return (v + m - 1) // m * m


# ---------------------------------------------------------------------------
# In-kernel helper: training-mode BatchNorm (batch statistics), single pass.
# ---------------------------------------------------------------------------
def _bn_scale_shift(acc, gamma, beta):
  """acc: (rows, Ct) f32.  Returns acc * scale + shift with batch stats."""
  inv_rows = 1.0 / acc.shape[0]
  mean = jnp.sum(acc, axis=0, keepdims=True) * inv_rows
  mean_sq = jnp.sum(acc * acc, axis=0, keepdims=True) * inv_rows
  var = mean_sq - mean * mean                       # biased variance
  scale = gamma * jax.lax.rsqrt(var + BN_EPS)
  shift = beta - mean * scale
  return acc * scale + shift


# ---------------------------------------------------------------------------
# Pallas kernels
# ---------------------------------------------------------------------------
def _stem_kernel(p1_ref, w1_ref, g1_ref, b1_ref,
                 xf_ref, wsc_ref, gsc_ref, bsc_ref,
                 out1_ref, sc_ref):
  """Fused: out1 = relu(bn1(conv1(x)));  sc = bn_sc(conv_sc(x)).

  conv1 is a single bf16 MXU matmul over im2col patches (contraction K*K*Cin);
  the 1x1 shortcut conv + its BN run in the same pallas_call / grid step.
  """
  acc1 = jnp.dot(p1_ref[...], w1_ref[...], preferred_element_type=jnp.float32)
  out1 = _bn_scale_shift(acc1, g1_ref[...], b1_ref[...])
  out1_ref[...] = jnp.maximum(out1, 0.0).astype(out1_ref.dtype)

  accs = jnp.dot(xf_ref[...], wsc_ref[...], preferred_element_type=jnp.float32)
  sc_ref[...] = _bn_scale_shift(accs, gsc_ref[...],
                                bsc_ref[...]).astype(sc_ref.dtype)


def _conv_bn_relu_kernel(p1_ref, w1_ref, g1_ref, b1_ref, out1_ref):
  """out1 = relu(bn1(conv1(x)))  (identity-shortcut variant)."""
  acc = jnp.dot(p1_ref[...], w1_ref[...], preferred_element_type=jnp.float32)
  out = _bn_scale_shift(acc, g1_ref[...], b1_ref[...])
  out1_ref[...] = jnp.maximum(out, 0.0).astype(out1_ref.dtype)


def _conv2_kernel(p2_ref, w2_ref, g2_ref, b2_ref, sc_ref, out_ref):
  """out = relu(bn2(conv2(out1)) + shortcut)."""
  acc = jnp.dot(p2_ref[...], w2_ref[...], preferred_element_type=jnp.float32)
  out = _bn_scale_shift(acc, g2_ref[...], b2_ref[...])
  out = out + sc_ref[...].astype(jnp.float32)
  out_ref[...] = jnp.maximum(out, 0.0).astype(out_ref.dtype)


# ---------------------------------------------------------------------------
# Host-side (XLA) data prep: im2col patches and weight packing.
# ---------------------------------------------------------------------------
def _im2col(x_nhwc, k, pad):
  """(N,H,W,C) -> (N*H*W, K*K*C) patches, column order (kh, kw, c)."""
  n, h, w, c = x_nhwc.shape
  xp = jnp.pad(x_nhwc, ((0, 0), (pad, pad), (pad, pad), (0, 0)))
  taps = [xp[:, kh:kh + h, kw:kw + w, :] for kh in range(k) for kw in range(k)]
  pat = jnp.concatenate(taps, axis=-1)
  return pat.reshape(n * h * w, k * k * c)


def _conv_w_to_mat(w_oihw, cin_pad, cout_pad):
  """OIHW weights -> bf16 (K*K*cin_pad, cout_pad) matrix, row order (kh,kw,ci)."""
  cout, cin, kh, kw = w_oihw.shape
  wm = jnp.transpose(w_oihw, (2, 3, 1, 0))                      # (K,K,I,O)
  wm = jnp.pad(wm, ((0, 0), (0, 0), (0, cin_pad - cin), (0, cout_pad - cout)))
  return wm.reshape(kh * kw * cin_pad, cout_pad).astype(jnp.bfloat16)


def _bn_param(v, cout_pad):
  """Per-channel BN parameter -> (1, cout_pad) f32, zero-padded channels."""
  return jnp.pad(v.astype(jnp.float32),
                 (0, cout_pad - v.shape[0])).reshape(1, cout_pad)


def _compiler_params():
  return pltpu.CompilerParams(
      dimension_semantics=("parallel",),        # Cout tiles are independent
      vmem_limit_bytes=32 * 1024 * 1024)


# ---------------------------------------------------------------------------
# BasicBlock: parameters + forward
# ---------------------------------------------------------------------------
def init_params(key, cin, cout, kernel=3, shortcut_kernel=1, stride=1):
  ks = jax.random.split(key, 7)
  p = {
      "w1": 0.1 * jax.random.normal(ks[0], (cout, cin, kernel, kernel), jnp.float32),
      "g1": 1.0 + 0.1 * jax.random.normal(ks[1], (cout,), jnp.float32),
      "b1": 0.1 * jax.random.normal(ks[2], (cout,), jnp.float32),
      "w2": 0.1 * jax.random.normal(ks[3], (cout, cout, kernel, kernel), jnp.float32),
      "g2": 1.0 + 0.1 * jax.random.normal(ks[4], (cout,), jnp.float32),
      "b2": 0.1 * jax.random.normal(ks[5], (cout,), jnp.float32),
  }
  if stride != 1 or cin != cout:
    p["wsc"] = 0.1 * jax.random.normal(
        ks[6], (cout, cin, shortcut_kernel, shortcut_kernel), jnp.float32)
    p["gsc"] = jnp.ones((cout,), jnp.float32)
    p["bsc"] = jnp.zeros((cout,), jnp.float32)
  return p


def basic_block_forward(x_nchw, params, stride=1):
  """Forward pass of BasicBlock (training-mode BN batch statistics)."""
  # TODO(synk): stride > 1 (strided conv) is not implemented in these kernels.
  assert stride == 1
  n, cin, h, w = x_nchw.shape
  cout, _, k, _ = params["w1"].shape
  assert k == 3, "module hard-codes padding=1 (shape-preserving only for k=3)"
  pad = k // 2
  rows = n * h * w
  cpad = _round_up(cout, LANE)          # lane-dense (padded) output channels
  tile_c = min(cpad, LANE)
  grid = (cpad // tile_c,)

  # NCHW f32 -> NHWC bf16 (bf16 MXU operands, halved activation DMA bytes).
  x = jnp.transpose(x_nchw, (0, 2, 3, 1)).astype(jnp.bfloat16)
  p1 = _im2col(x, k, pad)                                   # (rows, K*K*Cin)
  xf = x.reshape(rows, cin)                                 # (rows, Cin)

  w1 = _conv_w_to_mat(params["w1"], cin, cpad)
  g1, b1 = _bn_param(params["g1"], cpad), _bn_param(params["b1"], cpad)
  w2 = _conv_w_to_mat(params["w2"], cpad, cpad)
  g2, b2 = _bn_param(params["g2"], cpad), _bn_param(params["b2"], cpad)

  full = lambda a: pl.BlockSpec(a.shape, lambda j: (0,) * a.ndim)
  ctile = lambda d0: pl.BlockSpec((d0, tile_c), lambda j: (0, j))

  if "wsc" in params:
    wsc = _conv_w_to_mat(params["wsc"], cin, cpad)
    gsc, bsc = _bn_param(params["gsc"], cpad), _bn_param(params["bsc"], cpad)
    out1, sc = pl.pallas_call(
        _stem_kernel,
        grid=grid,
        in_specs=[full(p1), ctile(w1.shape[0]), ctile(1), ctile(1),
                  full(xf), ctile(wsc.shape[0]), ctile(1), ctile(1)],
        out_specs=[ctile(rows), ctile(rows)],
        out_shape=[jax.ShapeDtypeStruct((rows, cpad), jnp.bfloat16),
                   jax.ShapeDtypeStruct((rows, cpad), jnp.float32)],
        compiler_params=_compiler_params(),
    )(p1, w1, g1, b1, xf, wsc, gsc, bsc)
  else:
    out1 = pl.pallas_call(
        _conv_bn_relu_kernel,
        grid=grid,
        in_specs=[full(p1), ctile(w1.shape[0]), ctile(1), ctile(1)],
        out_specs=ctile(rows),
        out_shape=jax.ShapeDtypeStruct((rows, cpad), jnp.bfloat16),
        compiler_params=_compiler_params(),
    )(p1, w1, g1, b1)
    sc = jnp.pad(xf.astype(jnp.float32), ((0, 0), (0, cpad - cin)))

  # conv2 consumes the bf16, channel-padded out1; the padded channels are
  # exactly zero by construction (zero-padded weights/gamma/beta), so no
  # re-slicing is needed before the second fused kernel.
  p2 = _im2col(out1.reshape(n, h, w, cpad), k, pad)          # (rows, K*K*cpad)

  out = pl.pallas_call(
      _conv2_kernel,
      grid=grid,
      in_specs=[full(p2), ctile(w2.shape[0]), ctile(1), ctile(1), ctile(rows)],
      out_specs=ctile(rows),
      out_shape=jax.ShapeDtypeStruct((rows, cpad), jnp.float32),
      compiler_params=_compiler_params(),
  )(p2, w2, g2, b2, sc)

  out = out[:, :cout].reshape(n, h, w, cout)
  return jnp.transpose(out, (0, 3, 1, 2))                    # NHWC -> NCHW


# ---------------------------------------------------------------------------
# Pure-JAX reference (mirrors the PyTorch forward, NCHW, f32) for verification.
# ---------------------------------------------------------------------------
def _ref_conv(x, w, pad):
  return jax.lax.conv_general_dilated(
      x, w, (1, 1), [(pad, pad), (pad, pad)],
      dimension_numbers=("NCHW", "OIHW", "NCHW"))


def _ref_bn(x, g, b):
  mean = jnp.mean(x, axis=(0, 2, 3), keepdims=True)
  var = jnp.mean((x - mean) ** 2, axis=(0, 2, 3), keepdims=True)
  xn = (x - mean) * jax.lax.rsqrt(var + BN_EPS)
  return xn * g.reshape(1, -1, 1, 1) + b.reshape(1, -1, 1, 1)


def ref_forward(x, p):
  out = jax.nn.relu(_ref_bn(_ref_conv(x, p["w1"], 1), p["g1"], p["b1"]))
  out = _ref_bn(_ref_conv(out, p["w2"], 1), p["g2"], p["b2"])
  sc = _ref_bn(_ref_conv(x, p["wsc"], 0), p["gsc"], p["bsc"]) if "wsc" in p else x
  return jax.nn.relu(out + sc)


if __name__ == "__main__":
  key = jax.random.PRNGKey(0)
  kx, kp = jax.random.split(key)

  N, Cin, H, W = 2, 4, 16, 16
  Cout = 8   # Cin != Cout -> shortcut branch (1x1 conv + BN) is exercised.

  x = jax.random.normal(kx, (N, Cin, H, W), jnp.float32)
  params = init_params(kp, Cin, Cout)

  out = jax.block_until_ready(basic_block_forward(x, params, stride=1))
  assert out.shape == (N, Cout, H, W), out.shape

  ref = jax.block_until_ready(ref_forward(x, params))
  max_err = float(jnp.max(jnp.abs(out - ref)))
  # bf16 MXU operands (per perf guidance) -> tolerance looser than pure-f32.
  if max_err < 6e-2:
    print("KERNEL_OK")
  else:
    print(f"MISMATCH max_abs_err={max_err}")
</pallas_src>

<mosaic_0001>
module attributes {stable_mosaic.version = 11 : i64} {
  func.func @_stem_kernel(%arg0: i32, %arg1: memref<512x36xbf16, #tpu.memory_space<vmem>>, %arg2: memref<36x128xbf16, #tpu.memory_space<vmem>>, %arg3: memref<1x128xf32, #tpu.memory_space<vmem>>, %arg4: memref<1x128xf32, #tpu.memory_space<vmem>>, %arg5: memref<512x4xbf16, #tpu.memory_space<vmem>>, %arg6: memref<4x128xbf16, #tpu.memory_space<vmem>>, %arg7: memref<1x128xf32, #tpu.memory_space<vmem>>, %arg8: memref<1x128xf32, #tpu.memory_space<vmem>>, %arg9: memref<512x128xbf16, #tpu.memory_space<vmem>>, %arg10: memref<512x128xf32, #tpu.memory_space<vmem>>) attributes {dimension_semantics = [#tpu.dimension_semantics<parallel>], iteration_bounds = array<i64: 1>, scalar_prefetch = 0 : i64, scratch_operands = 0 : i64, tpu.core_type = #tpu.core_type<tc>, window_params = [{pipeline_mode = #tpu.pipeline_mode<synchronous>, transform_indices = @transform_0, window_bounds = array<i64: 512, 36>}, {transform_indices = @transform_1, window_bounds = array<i64: 36, 128>}, {transform_indices = @transform_2, window_bounds = array<i64: 1, 128>}, {transform_indices = @transform_3, window_bounds = array<i64: 1, 128>}, {pipeline_mode = #tpu.pipeline_mode<synchronous>, transform_indices = @transform_4, window_bounds = array<i64: 512, 4>}, {transform_indices = @transform_5, window_bounds = array<i64: 4, 128>}, {transform_indices = @transform_6, window_bounds = array<i64: 1, 128>}, {transform_indices = @transform_7, window_bounds = array<i64: 1, 128>}, {transform_indices = @transform_8, window_bounds = array<i64: 512, 128>}, {transform_indices = @transform_9, window_bounds = array<i64: 512, 128>}]} {
    %c0 = arith.constant 0 : index
    %c0_0 = arith.constant 0 : index
    %0 = vector.load %arg1[%c0, %c0_0] : memref<512x36xbf16, #tpu.memory_space<vmem>>, vector<512x36xbf16>
    %c0_1 = arith.constant 0 : index
    %c0_2 = arith.constant 0 : index
    %1 = vector.load %arg2[%c0_1, %c0_2] : memref<36x128xbf16, #tpu.memory_space<vmem>>, vector<36x128xbf16>
    %cst = arith.constant dense<0.000000e+00> : vector<512x128xf32>
    %2 = tpu.matmul %0, %1, %cst {dimension_numbers = #tpu.dot_dimension_numbers<[1], [0], [0], [1], [0, 0, 1, 1], [], []>} : vector<512x36xbf16>, vector<36x128xbf16>, vector<512x128xf32> -> vector<512x128xf32>
    %c0_3 = arith.constant 0 : index
    %c0_4 = arith.constant 0 : index
    %3 = vector.load %arg3[%c0_3, %c0_4] : memref<1x128xf32, #tpu.memory_space<vmem>>, vector<1x128xf32>
    %c0_5 = arith.constant 0 : index
    %c0_6 = arith.constant 0 : index
    %4 = vector.load %arg4[%c0_5, %c0_6] : memref<1x128xf32, #tpu.memory_space<vmem>>, vector<1x128xf32>
    %cst_7 = arith.constant dense<0.000000e+00> : vector<128xf32>
    %5 = vector.multi_reduction <add>, %2, %cst_7 [0] : vector<512x128xf32> to vector<128xf32>
    %6 = vector.shape_cast %5 : vector<128xf32> to vector<1x128xf32>
    %cst_8 = arith.constant 0.001953125 : f32
    %7 = vector.broadcast %cst_8 : f32 to vector<1x128xf32>
    %8 = arith.mulf %6, %7 : vector<1x128xf32>
    %9 = arith.mulf %2, %2 : vector<512x128xf32>
    %cst_9 = arith.constant dense<0.000000e+00> : vector<128xf32>
    %10 = vector.multi_reduction <add>, %9, %cst_9 [0] : vector<512x128xf32> to vector<128xf32>
    %11 = vector.shape_cast %10 : vector<128xf32> to vector<1x128xf32>
    %cst_10 = arith.constant 0.001953125 : f32
    %12 = vector.broadcast %cst_10 : f32 to vector<1x128xf32>
    %13 = arith.mulf %11, %12 : vector<1x128xf32>
    %14 = arith.mulf %8, %8 : vector<1x128xf32>
    %15 = arith.subf %13, %14 : vector<1x128xf32>
    %cst_11 = arith.constant 9.99999974E-6 : f32
    %16 = vector.broadcast %cst_11 : f32 to vector<1x128xf32>
    %17 = arith.addf %15, %16 : vector<1x128xf32>
    %18 = math.rsqrt %17 : vector<1x128xf32>
    %19 = arith.mulf %3, %18 : vector<1x128xf32>
    %20 = arith.mulf %8, %19 : vector<1x128xf32>
    %21 = arith.subf %4, %20 : vector<1x128xf32>
    %22 = vector.broadcast %19 : vector<1x128xf32> to vector<512x128xf32>
    %23 = arith.mulf %2, %22 : vector<512x128xf32>
    %24 = vector.broadcast %21 : vector<1x128xf32> to vector<512x128xf32>
    %25 = arith.addf %23, %24 : vector<512x128xf32>
    %cst_12 = arith.constant 0.000000e+00 : f32
    %26 = vector.broadcast %cst_12 : f32 to vector<512x128xf32>
    %27 = arith.maximumf %25, %26 : vector<512x128xf32>
    %28 = arith.truncf %27 : vector<512x128xf32> to vector<512x128xbf16>
    %c0_13 = arith.constant 0 : index
    %c0_14 = arith.constant 0 : index
    %29 = vector.load %arg9[%c0_13, %c0_14] : memref<512x128xbf16, #tpu.memory_space<vmem>>, vector<512x128xbf16>
    tpu.vector_store %arg9[%c0_13, %c0_14], %28 {strides = array<i32>} : memref<512x128xbf16, #tpu.memory_space<vmem>>, vector<512x128xbf16>,
    %c0_15 = arith.constant 0 : index
    %c0_16 = arith.constant 0 : index
    %30 = vector.load %arg5[%c0_15, %c0_16] : memref<512x4xbf16, #tpu.memory_space<vmem>>, vector<512x4xbf16>
    %c0_17 = arith.constant 0 : index
    %c0_18 = arith.constant 0 : index
    %31 = vector.load %arg6[%c0_17, %c0_18] : memref<4x128xbf16, #tpu.memory_space<vmem>>, vector<4x128xbf16>
    %cst_19 = arith.constant dense<0.000000e+00> : vector<512x128xf32>
    %32 = tpu.matmul %30, %31, %cst_19 {dimension_numbers = #tpu.dot_dimension_numbers<[1], [0], [0], [1], [0, 0, 1, 1], [], []>} : vector<512x4xbf16>, vector<4x128xbf16>, vector<512x128xf32> -> vector<512x128xf32>
    %c0_20 = arith.constant 0 : index
    %c0_21 = arith.constant 0 : index
    %33 = vector.load %arg7[%c0_20, %c0_21] : memref<1x128xf32, #tpu.memory_space<vmem>>, vector<1x128xf32>
    %c0_22 = arith.constant 0 : index
    %c0_23 = arith.constant 0 : index
    %34 = vector.load %arg8[%c0_22, %c0_23] : memref<1x128xf32, #tpu.memory_space<vmem>>, vector<1x128xf32>
    %cst_24 = arith.constant dense<0.000000e+00> : vector<128xf32>
    %35 = vector.multi_reduction <add>, %32, %cst_24 [0] : vector<512x128xf32> to vector<128xf32>
    %36 = vector.shape_cast %35 : vector<128xf32> to vector<1x128xf32>
    %cst_25 = arith.constant 0.001953125 : f32
    %37 = vector.broadcast %cst_25 : f32 to vector<1x128xf32>
    %38 = arith.mulf %36, %37 : vector<1x128xf32>
    %39 = arith.mulf %32, %32 : vector<512x128xf32>
    %cst_26 = arith.constant dense<0.000000e+00> : vector<128xf32>
    %40 = vector.multi_reduction <add>, %39, %cst_26 [0] : vector<512x128xf32> to vector<128xf32>
    %41 = vector.shape_cast %40 : vector<128xf32> to vector<1x128xf32>
    %cst_27 = arith.constant 0.001953125 : f32
    %42 = vector.broadcast %cst_27 : f32 to vector<1x128xf32>
    %43 = arith.mulf %41, %42 : vector<1x128xf32>
    %44 = arith.mulf %38, %38 : vector<1x128xf32>
    %45 = arith.subf %43, %44 : vector<1x128xf32>
    %cst_28 = arith.constant 9.99999974E-6 : f32
    %46 = vector.broadcast %cst_28 : f32 to vector<1x128xf32>
    %47 = arith.addf %45, %46 : vector<1x128xf32>
    %48 = math.rsqrt %47 : vector<1x128xf32>
    %49 = arith.mulf %33, %48 : vector<1x128xf32>
    %50 = arith.mulf %38, %49 : vector<1x128xf32>
    %51 = arith.subf %34, %50 : vector<1x128xf32>
    %52 = vector.broadcast %49 : vector<1x128xf32> to vector<512x128xf32>
    %53 = arith.mulf %32, %52 : vector<512x128xf32>
    %54 = vector.broadcast %51 : vector<1x128xf32> to vector<512x128xf32>
    %55 = arith.addf %53, %54 : vector<512x128xf32>
    %c0_29 = arith.constant 0 : index
    %c0_30 = arith.constant 0 : index
    %56 = vector.load %arg10[%c0_29, %c0_30] : memref<512x128xf32, #tpu.memory_space<vmem>>, vector<512x128xf32>
    tpu.vector_store %arg10[%c0_29, %c0_30], %55 {strides = array<i32>} : memref<512x128xf32, #tpu.memory_space<vmem>>, vector<512x128xf32>,
    return
  }
  func.func @transform_0(%arg0: i32) -> (i32, i32) {
    %c0_i32 = arith.constant 0 : i32
    %c0_i32_0 = arith.constant 0 : i32
    %c0_i32_1 = arith.constant 0 : i32
    return %c0_i32, %c0_i32_0 : i32, i32
  }
  func.func @transform_1(%arg0: i32) -> (i32, i32) {
    %c0_i32 = arith.constant 0 : i32
    %c0_i32_0 = arith.constant 0 : i32
    return %c0_i32, %arg0 : i32, i32
  }
  func.func @transform_2(%arg0: i32) -> (i32, i32) {
    %c0_i32 = arith.constant 0 : i32
    %c0_i32_0 = arith.constant 0 : i32
    return %c0_i32, %arg0 : i32, i32
  }
  func.func @transform_3(%arg0: i32) -> (i32, i32) {
    %c0_i32 = arith.constant 0 : i32
    %c0_i32_0 = arith.constant 0 : i32
    return %c0_i32, %arg0 : i32, i32
  }
  func.func @transform_4(%arg0: i32) -> (i32, i32) {
    %c0_i32 = arith.constant 0 : i32
    %c0_i32_0 = arith.constant 0 : i32
    %c0_i32_1 = arith.constant 0 : i32
    return %c0_i32, %c0_i32_0 : i32, i32
  }
  func.func @transform_5(%arg0: i32) -> (i32, i32) {
    %c0_i32 = arith.constant 0 : i32
    %c0_i32_0 = arith.constant 0 : i32
    return %c0_i32, %arg0 : i32, i32
  }
  func.func @transform_6(%arg0: i32) -> (i32, i32) {
    %c0_i32 = arith.constant 0 : i32
    %c0_i32_0 = arith.constant 0 : i32
    return %c0_i32, %arg0 : i32, i32
  }
  func.func @transform_7(%arg0: i32) -> (i32, i32) {
    %c0_i32 = arith.constant 0 : i32
    %c0_i32_0 = arith.constant 0 : i32
    return %c0_i32, %arg0 : i32, i32
  }
  func.func @transform_8(%arg0: i32) -> (i32, i32) {
    %c0_i32 = arith.constant 0 : i32
    %c0_i32_0 = arith.constant 0 : i32
    return %c0_i32, %arg0 : i32, i32
  }
  func.func @transform_9(%arg0: i32) -> (i32, i32) {
    %c0_i32 = arith.constant 0 : i32
    %c0_i32_0 = arith.constant 0 : i32
    return %c0_i32, %arg0 : i32, i32
  }
}

</mosaic_0001>

<llo_original>
// kernel: tpu_custom_call.1
$region0: #{tpu_custom_call.1}
  #allocation0 [shape = 'u32[]', space=smem, size = 0x4, offset = 0x4, fixed_abs, tag = 'smem constant byte address 0x4 - core index']
  #allocation1 [shape = 'u32[72,128]{1,0:T(1,128)}', space=vmem, size = 0x9000, scoped, tag = 'internal scratch']
  %s0 = inlined_call_operand.vmem [shape: bf16[512,36], index: 0, kind: input, shape index: {}]
  %s1 = inlined_call_operand.vmem [shape: bf16[36,128], index: 1, kind: input, shape index: {}]
  %s2 = inlined_call_operand.vmem [shape: f32[1,128], index: 2, kind: input, shape index: {}]
  %s3 = inlined_call_operand.vmem [shape: f32[1,128], index: 3, kind: input, shape index: {}]
  %s4 = inlined_call_operand.vmem [shape: bf16[512,4], index: 4, kind: input, shape index: {}]
  %s5 = inlined_call_operand.vmem [shape: bf16[4,128], index: 5, kind: input, shape index: {}]
  %s6 = inlined_call_operand.vmem [shape: f32[1,128], index: 6, kind: input, shape index: {}]
  %s7 = inlined_call_operand.vmem [shape: f32[1,128], index: 7, kind: input, shape index: {}]
  %s8 = inlined_call_operand.hbm [shape: bf16[512,128], index: 8, kind: output, shape index: {0}]
  %s9 = inlined_call_operand.hbm [shape: f32[512,128], index: 9, kind: output, shape index: {1}]
  %10 = xla_tuple %s8, %s9
  %s11 = sld [smem:[#allocation0]]
  $region50: #{tpu_custom_call.1} parent=0
    _
  %s13 = ssub.s32 1, %s11
  %s14 = scalar_select 0, %s13, %s11
  $region1: #{tpu_custom_call.1} parent=0
    #allocation2 [shape = 'u8[131072]{0}', space=vmem, size = 0x20000, scoped, tag = 'output window, operand 0, single buffered']
    #allocation3 [shape = 's32[1]{0}', space=sflag, size = 0x4, scoped, tag = 'scoped memory for tpu_custom_call.1']
    #allocation4 [shape = 'u8[262144]{0}', space=vmem, size = 0x40000, scoped, tag = 'output window, operand 1, single buffered']
    #allocation5 [shape = 's32[1]{0}', space=sflag, size = 0x4, scoped, tag = 'scoped memory for tpu_custom_call.1']
    %15 = vsyncpa [#allocation3], 0
    %16 = vsyncpa [#allocation5], 0
    // Predicated region
    $region2: #{tpu_custom_call.1} parent=1 // pred_check
      _
    $region3: #{tpu_custom_call.1} parent=1 // pred_check_branch
      %18 = sbr.rel (0) target = $region5
    $region4: #{tpu_custom_call.1} parent=1 // pred_region
      _
    $region5: #{tpu_custom_call.1} parent=1 // pred_fallthru
      _
    // Predicated region
    $region6: #{tpu_custom_call.1} parent=1 // pred_check
      _
    $region7: #{tpu_custom_call.1} parent=1 // pred_check_branch
      %20 = sbr.rel (0) target = $region9
    $region8: #{tpu_custom_call.1} parent=1 // pred_region
      _
    $region9: #{tpu_custom_call.1} parent=1 // pred_fallthru
      _
    // Predicated region
    $region10: #{tpu_custom_call.1} parent=1 // pred_check
      _
    $region11: #{tpu_custom_call.1} parent=1 // pred_check_branch
      %22 = sbr.rel (0) target = $region13
    $region12: #{tpu_custom_call.1} parent=1 // pred_region
      _
    $region13: #{tpu_custom_call.1} parent=1 // pred_fallthru
      _
    // Predicated region
    $region14: #{tpu_custom_call.1} parent=1 // pred_check
      _
    $region15: #{tpu_custom_call.1} parent=1 // pred_check_branch
      %24 = sbr.rel (0) target = $region17
    $region16: #{tpu_custom_call.1} parent=1 // pred_region
      _
    $region17: #{tpu_custom_call.1} parent=1 // pred_fallthru
      _
    // Predicated region
    $region18: #{tpu_custom_call.1} parent=1 // pred_check
      _
    $region19: #{tpu_custom_call.1} parent=1 // pred_check_branch
      %26 = sbr.rel (0) target = $region21
    $region20: #{tpu_custom_call.1} parent=1 // pred_region
      _
    $region21: #{tpu_custom_call.1} parent=1 // pred_fallthru
      _
    // Predicated region
    $region22: #{tpu_custom_call.1} parent=1 // pred_check
      _
    $region23: #{tpu_custom_call.1} parent=1 // pred_check_branch
      %28 = sbr.rel (0) target = $region25
    $region24: #{tpu_custom_call.1} parent=1 // pred_region
      _
    $region25: #{tpu_custom_call.1} parent=1 // pred_fallthru
      _
    // Predicated region
    $region26: #{tpu_custom_call.1} parent=1 // pred_check
      _
    $region27: #{tpu_custom_call.1} parent=1 // pred_check_branch
      %30 = sbr.rel (0) target = $region29
    $region28: #{tpu_custom_call.1} parent=1 // pred_region
      _
    $region29: #{tpu_custom_call.1} parent=1 // pred_fallthru
      _
    // Predicated region
    $region30: #{tpu_custom_call.1} parent=1 // pred_check
      _
    $region31: #{tpu_custom_call.1} parent=1 // pred_check_branch
      %32 = sbr.rel (0) target = $region33
    $region32: #{tpu_custom_call.1} parent=1 // pred_region
      _
    $region33: #{tpu_custom_call.1} parent=1 // pred_fallthru
      _
    %v34 = vld [vmem:[%s0] sm:$0xf]
    %v35 = vld [vmem:[%s0 + $0x4] sm:$0xf]
    %v36 = vld [vmem:[%s0 + $0x8] sm:$0xf]
    %v37 = vld [vmem:[%s0 + $0xc] sm:$0xf]
    %v38 = vld [vmem:[%s0 + $0x10] sm:$0xf]
    %v39 = vld [vmem:[%s0 + $0x14] sm:$0xf]
    %v40 = vld [vmem:[%s0 + $0x18] sm:$0xf]
    %v41 = vld [vmem:[%s0 + $0x1c] sm:$0xf]
    %v42 = vld [vmem:[%s0 + $0x20] sm:$0xf]
    %v43 = vld [vmem:[%s0 + $0x24] sm:$0xf]
    %v44 = vld [vmem:[%s0 + $0x28] sm:$0xf]
    %v45 = vld [vmem:[%s0 + $0x2c] sm:$0xf]
    %v46 = vld [vmem:[%s0 + $0x30] sm:$0xf]
    %v47 = vld [vmem:[%s0 + $0x34] sm:$0xf]
    %v48 = vld [vmem:[%s0 + $0x38] sm:$0xf]
    %v49 = vld [vmem:[%s0 + $0x3c] sm:$0xf]
    %v50 = vld [vmem:[%s0 + $0x40] sm:$0xf]
    %v51 = vld [vmem:[%s0 + $0x44] sm:$0xf]
    %v52 = vld [vmem:[%s0 + $0x48] sm:$0xf]
    %v53 = vld [vmem:[%s0 + $0x4c] sm:$0xf]
    %v54 = vld [vmem:[%s0 + $0x50] sm:$0xf]
    %v55 = vld [vmem:[%s0 + $0x54] sm:$0xf]
    %v56 = vld [vmem:[%s0 + $0x58] sm:$0xf]
    %v57 = vld [vmem:[%s0 + $0x5c] sm:$0xf]
    %v58 = vld [vmem:[%s0 + $0x60] sm:$0xf]
    %v59 = vld [vmem:[%s0 + $0x64] sm:$0xf]
    %v60 = vld [vmem:[%s0 + $0x68] sm:$0xf]
    %v61 = vld [vmem:[%s0 + $0x6c] sm:$0xf]
    %v62 = vld [vmem:[%s0 + $0x70] sm:$0xf]
    %v63 = vld [vmem:[%s0 + $0x74] sm:$0xf]
    %v64 = vld [vmem:[%s0 + $0x78] sm:$0xf]
    %v65 = vld [vmem:[%s0 + $0x7c] sm:$0xf]
    %v66 = vld [vmem:[%s0 + $0x80] sm:$0xf]
    %v67 = vld [vmem:[%s0 + $0x84] sm:$0xf]
    %v68 = vld [vmem:[%s0 + $0x88] sm:$0xf]
    %v69 = vld [vmem:[%s0 + $0x8c] sm:$0xf]
    %v70 = vld [vmem:[%s0 + $0x90] sm:$0xf]
    %v71 = vld [vmem:[%s0 + $0x94] sm:$0xf]
    %v72 = vld [vmem:[%s0 + $0x98] sm:$0xf]
    %v73 = vld [vmem:[%s0 + $0x9c] sm:$0xf]
    %v74 = vld [vmem:[%s0 + $0xa0] sm:$0xf]
    %v75 = vld [vmem:[%s0 + $0xa4] sm:$0xf]
    %v76 = vld [vmem:[%s0 + $0xa8] sm:$0xf]
    %v77 = vld [vmem:[%s0 + $0xac] sm:$0xf]
    %v78 = vld [vmem:[%s0 + $0xb0] sm:$0xf]
    %v79 = vld [vmem:[%s0 + $0xb4] sm:$0xf]
    %v80 = vld [vmem:[%s0 + $0xb8] sm:$0xf]
    %v81 = vld [vmem:[%s0 + $0xbc] sm:$0xf]
    %v82 = vld [vmem:[%s0 + $0xc0] sm:$0xf]
    %v83 = vld [vmem:[%s0 + $0xc4] sm:$0xf]
    %v84 = vld [vmem:[%s0 + $0xc8] sm:$0xf]
    %v85 = vld [vmem:[%s0 + $0xcc] sm:$0xf]
    %v86 = vld [vmem:[%s0 + $0xd0] sm:$0xf]
    %v87 = vld [vmem:[%s0 + $0xd4] sm:$0xf]
    %v88 = vld [vmem:[%s0 + $0xd8] sm:$0xf]
    %v89 = vld [vmem:[%s0 + $0xdc] sm:$0xf]
    %v90 = vld [vmem:[%s0 + $0xe0] sm:$0xf]
    %v91 = vld [vmem:[%s0 + $0xe4] sm:$0xf]
    %v92 = vld [vmem:[%s0 + $0xe8] sm:$0xf]
    %v93 = vld [vmem:[%s0 + $0xec] sm:$0xf]
    %v94 = vld [vmem:[%s0 + $0xf0] sm:$0xf]
    %v95 = vld [vmem:[%s0 + $0xf4] sm:$0xf]
    %v96 = vld [vmem:[%s0 + $0xf8] sm:$0xf]
    %v97 = vld [vmem:[%s0 + $0xfc] sm:$0xf]
    %v98 = vld [vmem:[%s1] sm:$0xf]
    %v99 = vld [vmem:[%s1 + $0x4] sm:$0xf]
    %v100 = vld [vmem:[%s1 + $0x8] sm:$0xf]
    %v101 = vld [vmem:[%s1 + $0xc] sm:$0xf]
    %v102 = vld [vmem:[%s1 + $0x10] sm:$0x3]
    %v167 = vunpack.c.l.b16 %v34
    %v168 = vunpack.c.l.b16 %v35
    %v169 = vunpack.c.l.b16 %v36
    %v170 = vunpack.c.l.b16 %v37
    %v171 = vunpack.c.l.b16 %v38
    %v172 = vunpack.c.l.b16 %v39
    %v173 = vunpack.c.l.b16 %v40
    %v174 = vunpack.c.l.b16 %v41
    %v175 = vunpack.c.l.b16 %v42
    %v176 = vunpack.c.l.b16 %v43
    %v177 = vunpack.c.l.b16 %v44
    %v178 = vunpack.c.l.b16 %v45
    %v179 = vunpack.c.l.b16 %v46
    %v180 = vunpack.c.l.b16 %v47
    %v181 = vunpack.c.l.b16 %v48
    %v182 = vunpack.c.l.b16 %v49
    %v183 = vunpack.c.l.b16 %v50
    %v184 = vunpack.c.l.b16 %v51
    %v185 = vunpack.c.l.b16 %v52
    %v186 = vunpack.c.l.b16 %v53
    %v187 = vunpack.c.l.b16 %v54
    %v188 = vunpack.c.l.b16 %v55
    %v189 = vunpack.c.l.b16 %v56
    %v190 = vunpack.c.l.b16 %v57
    %v191 = vunpack.c.l.b16 %v58
    %v192 = vunpack.c.l.b16 %v59
    %v193 = vunpack.c.l.b16 %v60
    %v194 = vunpack.c.l.b16 %v61
    %v195 = vunpack.c.l.b16 %v62
    %v196 = vunpack.c.l.b16 %v63
    %v197 = vunpack.c.l.b16 %v64
    %v198 = vunpack.c.l.b16 %v65
    %v199 = vunpack.c.l.b16 %v66
    %v200 = vunpack.c.l.b16 %v67
    %v201 = vunpack.c.l.b16 %v68
    %v202 = vunpack.c.l.b16 %v69
    %v203 = vunpack.c.l.b16 %v70
    %v204 = vunpack.c.l.b16 %v71
    %v205 = vunpack.c.l.b16 %v72
    %v206 = vunpack.c.l.b16 %v73
    %v207 = vunpack.c.l.b16 %v74
    %v208 = vunpack.c.l.b16 %v75
    %v209 = vunpack.c.l.b16 %v76
    %v210 = vunpack.c.l.b16 %v77
    %v211 = vunpack.c.l.b16 %v78
    %v212 = vunpack.c.l.b16 %v79
    %v213 = vunpack.c.l.b16 %v80
    %v214 = vunpack.c.l.b16 %v81
    %v215 = vunpack.c.l.b16 %v82
    %v216 = vunpack.c.l.b16 %v83
    %v217 = vunpack.c.l.b16 %v84
    %v218 = vunpack.c.l.b16 %v85
    %v219 = vunpack.c.l.b16 %v86
    %v220 = vunpack.c.l.b16 %v87
    %v221 = vunpack.c.l.b16 %v88
    %v222 = vunpack.c.l.b16 %v89
    %v223 = vunpack.c.l.b16 %v90
    %v224 = vunpack.c.l.b16 %v91
    %v225 = vunpack.c.l.b16 %v92
    %v226 = vunpack.c.l.b16 %v93
    %v227 = vunpack.c.l.b16 %v94
    %v228 = vunpack.c.l.b16 %v95
    %v229 = vunpack.c.l.b16 %v96
    %v230 = vunpack.c.l.b16 %v97
    %v231 = vpack.c.b16 %v168, %v167
    %v232 = vpack.c.b16 %v170, %v169
    %v233 = vpack.c.b16 %v172, %v171
    %v234 = vpack.c.b16 %v174, %v173
    %v235 = vpack.c.b16 %v176, %v175
    %v236 = vpack.c.b16 %v178, %v177
    %v237 = vpack.c.b16 %v180, %v179
    %v238 = vpack.c.b16 %v182, %v181
    %v239 = vpack.c.b16 %v184, %v183
    %v240 = vpack.c.b16 %v186, %v185
    %v241 = vpack.c.b16 %v188, %v187
    %v242 = vpack.c.b16 %v190, %v189
    %v243 = vpack.c.b16 %v192, %v191
    %v244 = vpack.c.b16 %v194, %v193
    %v245 = vpack.c.b16 %v196, %v195
    %v246 = vpack.c.b16 %v198, %v197
    %v247 = vpack.c.b16 %v200, %v199
    %v248 = vpack.c.b16 %v202, %v201
    %v249 = vpack.c.b16 %v204, %v203
    %v250 = vpack.c.b16 %v206, %v205
    %v251 = vpack.c.b16 %v208, %v207
    %v252 = vpack.c.b16 %v210, %v209
    %v253 = vpack.c.b16 %v212, %v211
    %v254 = vpack.c.b16 %v214, %v213
    %v255 = vpack.c.b16 %v216, %v215
    %v256 = vpack.c.b16 %v218, %v217
    %v257 = vpack.c.b16 %v220, %v219
    %v258 = vpack.c.b16 %v222, %v221
    %v259 = vpack.c.b16 %v224, %v223
    %v260 = vpack.c.b16 %v226, %v225
    %v261 = vpack.c.b16 %v228, %v227
    %v262 = vpack.c.b16 %v230, %v229
    %v268 = vunpack.c.l.b16 %v98
    %v269 = vunpack.c.l.b16 %v99
    %v270 = vunpack.c.l.b16 %v100
    %v271 = vunpack.c.l.b16 %v101
    %v272 = vunpack.c.l.b16 %v102
    %v273 = vpack.c.b16 %v269, %v268
    %v274 = vpack.c.b16 %v271, %v270
    %v275 = vpack.c.b16 %v272, %v272
    %vm278 = vcmask 293888
    %v280 = vsel %vm278, %v231, 0
    %v283 = vsel %vm278, %v232, 0
    %v286 = vsel %vm278, %v233, 0
    %v289 = vsel %vm278, %v234, 0
    %v292 = vsel %vm278, %v235, 0
    %v295 = vsel %vm278, %v236, 0
    %v298 = vsel %vm278, %v237, 0
    %v301 = vsel %vm278, %v238, 0
    %v304 = vsel %vm278, %v239, 0
    %v307 = vsel %vm278, %v240, 0
    %v310 = vsel %vm278, %v241, 0
    %v313 = vsel %vm278, %v242, 0
    %v316 = vsel %vm278, %v243, 0
    %v319 = vsel %vm278, %v244, 0
    %v322 = vsel %vm278, %v245, 0
    %v325 = vsel %vm278, %v246, 0
    %v328 = vsel %vm278, %v247, 0
    %v331 = vsel %vm278, %v248, 0
    %v334 = vsel %vm278, %v249, 0
    %v337 = vsel %vm278, %v250, 0
    %v340 = vsel %vm278, %v251, 0
    %v343 = vsel %vm278, %v252, 0
    %v346 = vsel %vm278, %v253, 0
    %v349 = vsel %vm278, %v254, 0
    %v352 = vsel %vm278, %v255, 0
    %v355 = vsel %vm278, %v256, 0
    %v358 = vsel %vm278, %v257, 0
    %v361 = vsel %vm278, %v258, 0
    %v364 = vsel %vm278, %v259, 0
    %v367 = vsel %vm278, %v260, 0
    %v370 = vsel %vm278, %v261, 0
    %v373 = vsel %vm278, %v262, 0
    %vm375 = vcmask 1041408
    %v377 = vsel %vm375, %v275, 0
    %379 = vmatpush.bf16.msra.mxu0 0
    %380 = vmatpush.bf16.msra.mxu0 0
    %381 = vmatpush.bf16.msra.mxu0 0
    %382 = vmatpush.bf16.msra.mxu0 0
    %383 = vmatpush.bf16.msra.mxu0 0
    %384 = vmatpush.bf16.msra.mxu0 %v377
    %385 = vmatpush.bf16.msra.mxu0 %v274
    %386 = vmatpush.bf16.msra.mxu0 %v273
    %387 = vmatmul.bf16.gmra.mxu0 %v280
    %v388 = vpop.f32.mrf.mxu0
    %v389 = vadd.f32 0.0, %v388
    %v390 = vpop.f32.mrf.mxu0
    %v391 = vadd.f32 0.0, %v390
    %392 = vmatmul.bf16.gmra.mxu0 %v283
    %v393 = vpop.f32.mrf.mxu0
    %v394 = vadd.f32 0.0, %v393
    %v395 = vpop.f32.mrf.mxu0
    %v396 = vadd.f32 0.0, %v395
    %397 = vmatmul.bf16.gmra.mxu0 %v286
    %v398 = vpop.f32.mrf.mxu0
    %v399 = vadd.f32 0.0, %v398
    %v400 = vpop.f32.mrf.mxu0
    %v401 = vadd.f32 0.0, %v400
    %402 = vmatmul.bf16.gmra.mxu0 %v289
    %v403 = vpop.f32.mrf.mxu0
    %v404 = vadd.f32 0.0, %v403
    %v405 = vpop.f32.mrf.mxu0
    %v406 = vadd.f32 0.0, %v405
    %407 = vmatmul.bf16.gmra.mxu0 %v292
    %v408 = vpop.f32.mrf.mxu0
    %v409 = vadd.f32 0.0, %v408
    %v410 = vpop.f32.mrf.mxu0
    %v411 = vadd.f32 0.0, %v410
    %412 = vmatmul.bf16.gmra.mxu0 %v295
    %v413 = vpop.f32.mrf.mxu0
    %v414 = vadd.f32 0.0, %v413
    %v415 = vpop.f32.mrf.mxu0
    %v416 = vadd.f32 0.0, %v415
    %417 = vmatmul.bf16.gmra.mxu0 %v298
    %v418 = vpop.f32.mrf.mxu0
    %v419 = vadd.f32 0.0, %v418
    %v420 = vpop.f32.mrf.mxu0
    %v421 = vadd.f32 0.0, %v420
    %422 = vmatmul.bf16.gmra.mxu0 %v301
    %v423 = vpop.f32.mrf.mxu0
    %v424 = vadd.f32 0.0, %v423
    %v425 = vpop.f32.mrf.mxu0
    %v426 = vadd.f32 0.0, %v425
    %427 = vmatmul.bf16.gmra.mxu0 %v304
    %v428 = vpop.f32.mrf.mxu0
    %v429 = vadd.f32 0.0, %v428
    %v430 = vpop.f32.mrf.mxu0
    %v431 = vadd.f32 0.0, %v430
    %432 = vmatmul.bf16.gmra.mxu0 %v307
    %v433 = vpop.f32.mrf.mxu0
    %v434 = vadd.f32 0.0, %v433
    %v435 = vpop.f32.mrf.mxu0
    %v436 = vadd.f32 0.0, %v435
    %437 = vmatmul.bf16.gmra.mxu0 %v310
    %v438 = vpop.f32.mrf.mxu0
    %v439 = vadd.f32 0.0, %v438
    %v440 = vpop.f32.mrf.mxu0
    %v441 = vadd.f32 0.0, %v440
    %442 = vmatmul.bf16.gmra.mxu0 %v313
    %v443 = vpop.f32.mrf.mxu0
    %v444 = vadd.f32 0.0, %v443
    %v445 = vpop.f32.mrf.mxu0
    %v446 = vadd.f32 0.0, %v445
    %447 = vmatmul.bf16.gmra.mxu0 %v316
    %v448 = vpop.f32.mrf.mxu0
    %v449 = vadd.f32 0.0, %v448
    %v450 = vpop.f32.mrf.mxu0
    %v451 = vadd.f32 0.0, %v450
    %452 = vmatmul.bf16.gmra.mxu0 %v319
    %v453 = vpop.f32.mrf.mxu0
    %v454 = vadd.f32 0.0, %v453
    %v455 = vpop.f32.mrf.mxu0
    %v456 = vadd.f32 0.0, %v455
    %457 = vmatmul.bf16.gmra.mxu0 %v322
    %v458 = vpop.f32.mrf.mxu0
    %v459 = vadd.f32 0.0, %v458
    %v460 = vpop.f32.mrf.mxu0
    %v461 = vadd.f32 0.0, %v460
    %462 = vmatmul.bf16.gmra.mxu0 %v325
    %v463 = vpop.f32.mrf.mxu0
    %v464 = vadd.f32 0.0, %v463
    %v465 = vpop.f32.mrf.mxu0
    %v466 = vadd.f32 0.0, %v465
    %467 = vmatmul.bf16.gmra.mxu0 %v328
    %v468 = vpop.f32.mrf.mxu0
    %v469 = vadd.f32 0.0, %v468
    %v470 = vpop.f32.mrf.mxu0
    %v471 = vadd.f32 0.0, %v470
    %472 = vmatmul.bf16.gmra.mxu0 %v331
    %v473 = vpop.f32.mrf.mxu0
    %v474 = vadd.f32 0.0, %v473
    %v475 = vpop.f32.mrf.mxu0
    %v476 = vadd.f32 0.0, %v475
    %477 = vmatmul.bf16.gmra.mxu0 %v334
    %v478 = vpop.f32.mrf.mxu0
    %v479 = vadd.f32 0.0, %v478
    %v480 = vpop.f32.mrf.mxu0
    %v481 = vadd.f32 0.0, %v480
    %482 = vmatmul.bf16.gmra.mxu0 %v337
    %v483 = vpop.f32.mrf.mxu0
    %v484 = vadd.f32 0.0, %v483
    %v485 = vpop.f32.mrf.mxu0
    %v486 = vadd.f32 0.0, %v485
    %487 = vmatmul.bf16.gmra.mxu0 %v340
    %v488 = vpop.f32.mrf.mxu0
    %v489 = vadd.f32 0.0, %v488
    %v490 = vpop.f32.mrf.mxu0
    %v491 = vadd.f32 0.0, %v490
    %492 = vmatmul.bf16.gmra.mxu0 %v343
    %v493 = vpop.f32.mrf.mxu0
    %v494 = vadd.f32 0.0, %v493
    %v495 = vpop.f32.mrf.mxu0
    %v496 = vadd.f32 0.0, %v495
    %497 = vmatmul.bf16.gmra.mxu0 %v346
    %v498 = vpop.f32.mrf.mxu0
    %v499 = vadd.f32 0.0, %v498
    %v500 = vpop.f32.mrf.mxu0
    %v501 = vadd.f32 0.0, %v500
    %502 = vmatmul.bf16.gmra.mxu0 %v349
    %v503 = vpop.f32.mrf.mxu0
    %v504 = vadd.f32 0.0, %v503
    %v505 = vpop.f32.mrf.mxu0
    %v506 = vadd.f32 0.0, %v505
    %507 = vmatmul.bf16.gmra.mxu0 %v352
    %v508 = vpop.f32.mrf.mxu0
    %v509 = vadd.f32 0.0, %v508
    %v510 = vpop.f32.mrf.mxu0
    %v511 = vadd.f32 0.0, %v510
    %512 = vmatmul.bf16.gmra.mxu0 %v355
    %v513 = vpop.f32.mrf.mxu0
    %v514 = vadd.f32 0.0, %v513
    %v515 = vpop.f32.mrf.mxu0
    %v516 = vadd.f32 0.0, %v515
    %517 = vmatmul.bf16.gmra.mxu0 %v358
    %v518 = vpop.f32.mrf.mxu0
    %v519 = vadd.f32 0.0, %v518
    %v520 = vpop.f32.mrf.mxu0
    %v521 = vadd.f32 0.0, %v520
    %522 = vmatmul.bf16.gmra.mxu0 %v361
    %v523 = vpop.f32.mrf.mxu0
    %v524 = vadd.f32 0.0, %v523
    %v525 = vpop.f32.mrf.mxu0
    %v526 = vadd.f32 0.0, %v525
    %527 = vmatmul.bf16.gmra.mxu0 %v364
    %v528 = vpop.f32.mrf.mxu0
    %v529 = vadd.f32 0.0, %v528
    %v530 = vpop.f32.mrf.mxu0
    %v531 = vadd.f32 0.0, %v530
    %532 = vmatmul.bf16.gmra.mxu0 %v367
    %v533 = vpop.f32.mrf.mxu0
    %v534 = vadd.f32 0.0, %v533
    %v535 = vpop.f32.mrf.mxu0
    %v536 = vadd.f32 0.0, %v535
    %537 = vmatmul.bf16.gmra.mxu0 %v370
    %v538 = vpop.f32.mrf.mxu0
    %v539 = vadd.f32 0.0, %v538
    %v540 = vpop.f32.mrf.mxu0
    %v541 = vadd.f32 0.0, %v540
    %542 = vmatmul.bf16.gmra.mxu0 %v373
    %v543 = vpop.f32.mrf.mxu0
    %v544 = vadd.f32 0.0, %v543
    %v545 = vpop.f32.mrf.mxu0
    %v546 = vadd.f32 0.0, %v545
    %547 = vdwg.mxu0
    %v548 = vld [vmem:[%s2] sm:$0x1]
    %v549 = vld [vmem:[%s3] sm:$0x1]
    %v550 = vadd.f32 %v389, %v391
    %v551 = vadd.f32 %v550, %v394
    %v552 = vadd.f32 %v551, %v396
    %v553 = vadd.f32 %v552, %v399
    %v554 = vadd.f32 %v553, %v401
    %v555 = vadd.f32 %v554, %v404
    %v556 = vadd.f32 %v555, %v406
    %v557 = vadd.f32 %v556, %v409
    %v558 = vadd.f32 %v557, %v411
    %v559 = vadd.f32 %v558, %v414
    %v560 = vadd.f32 %v559, %v416
    %v561 = vadd.f32 %v560, %v419
    %v562 = vadd.f32 %v561, %v421
    %v563 = vadd.f32 %v562, %v424
    %v564 = vadd.f32 %v563, %v426
    %v565 = vadd.f32 %v564, %v429
    %v566 = vadd.f32 %v565, %v431
    %v567 = vadd.f32 %v566, %v434
    %v568 = vadd.f32 %v567, %v436
    %v569 = vadd.f32 %v568, %v439
    %v570 = vadd.f32 %v569, %v441
    %v571 = vadd.f32 %v570, %v444
    %v572 = vadd.f32 %v571, %v446
    %v573 = vadd.f32 %v572, %v449
    %v574 = vadd.f32 %v573, %v451
    %v575 = vadd.f32 %v574, %v454
    %v576 = vadd.f32 %v575, %v456
    %v577 = vadd.f32 %v576, %v459
    %v578 = vadd.f32 %v577, %v461
    %v579 = vadd.f32 %v578, %v464
    %v580 = vadd.f32 %v579, %v466
    %v581 = vadd.f32 %v580, %v469
    %v582 = vadd.f32 %v581, %v471
    %v583 = vadd.f32 %v582, %v474
    %v584 = vadd.f32 %v583, %v476
    %v585 = vadd.f32 %v584, %v479
    %v586 = vadd.f32 %v585, %v481
    %v587 = vadd.f32 %v586, %v484
    %v588 = vadd.f32 %v587, %v486
    %v589 = vadd.f32 %v588, %v489
    %v590 = vadd.f32 %v589, %v491
    %v591 = vadd.f32 %v590, %v494
    %v592 = vadd.f32 %v591, %v496
    %v593 = vadd.f32 %v592, %v499
    %v594 = vadd.f32 %v593, %v501
    %v595 = vadd.f32 %v594, %v504
    %v596 = vadd.f32 %v595, %v506
    %v597 = vadd.f32 %v596, %v509
    %v598 = vadd.f32 %v597, %v511
    %v599 = vadd.f32 %v598, %v514
    %v600 = vadd.f32 %v599, %v516
    %v601 = vadd.f32 %v600, %v519
    %v602 = vadd.f32 %v601, %v521
    %v603 = vadd.f32 %v602, %v524
    %v604 = vadd.f32 %v603, %v526
    %v605 = vadd.f32 %v604, %v529
    %v606 = vadd.f32 %v605, %v531
    %v607 = vadd.f32 %v606, %v534
    %v608 = vadd.f32 %v607, %v536
    %v609 = vadd.f32 %v608, %v539
    %v610 = vadd.f32 %v609, %v541
    %v611 = vadd.f32 %v610, %v544
    %v612 = vadd.f32 %v611, %v546
    %v613 = vrot.slane %v612, 4
    %v614 = vadd.f32 %v612, %v613
    %v615 = vrot.slane %v614, 2
    %v616 = vadd.f32 %v614, %v615
    %v617 = vrot.slane %v616, 1
    %v618 = vadd.f32 %v616, %v617
    %v619 = vmul.f32 %v618, 0.001953125
    %v620 = vmul.f32 %v389, %v389
    %v621 = vmul.f32 %v391, %v391
    %v622 = vmul.f32 %v394, %v394
    %v623 = vmul.f32 %v396, %v396
    %v624 = vmul.f32 %v399, %v399
    %v625 = vmul.f32 %v401, %v401
    %v626 = vmul.f32 %v404, %v404
    %v627 = vmul.f32 %v406, %v406
    %v628 = vmul.f32 %v409, %v409
    %v629 = vmul.f32 %v411, %v411
    %v630 = vmul.f32 %v414, %v414
    %v631 = vmul.f32 %v416, %v416
    %v632 = vmul.f32 %v419, %v419
    %v633 = vmul.f32 %v421, %v421
    %v634 = vmul.f32 %v424, %v424
    %v635 = vmul.f32 %v426, %v426
    %v636 = vmul.f32 %v429, %v429
    %v637 = vmul.f32 %v431, %v431
    %v638 = vmul.f32 %v434, %v434
    %v639 = vmul.f32 %v436, %v436
    %v640 = vmul.f32 %v439, %v439
    %v641 = vmul.f32 %v441, %v441
    %v642 = vmul.f32 %v444, %v444
    %v643 = vmul.f32 %v446, %v446
    %v644 = vmul.f32 %v449, %v449
    %v645 = vmul.f32 %v451, %v451
    %v646 = vmul.f32 %v454, %v454
    %v647 = vmul.f32 %v456, %v456
    %v648 = vmul.f32 %v459, %v459
    %v649 = vmul.f32 %v461, %v461
    %v650 = vmul.f32 %v464, %v464
    %v651 = vmul.f32 %v466, %v466
    %v652 = vmul.f32 %v469, %v469
    %v653 = vmul.f32 %v471, %v471
    %v654 = vmul.f32 %v474, %v474
    %v655 = vmul.f32 %v476, %v476
    %v656 = vmul.f32 %v479, %v479
    %v657 = vmul.f32 %v481, %v481
    %v658 = vmul.f32 %v484, %v484
    %v659 = vmul.f32 %v486, %v486
    %v660 = vmul.f32 %v489, %v489
    %v661 = vmul.f32 %v491, %v491
    %v662 = vmul.f32 %v494, %v494
    %v663 = vmul.f32 %v496, %v496
    %v664 = vmul.f32 %v499, %v499
    %v665 = vmul.f32 %v501, %v501
    %v666 = vmul.f32 %v504, %v504
    %v667 = vmul.f32 %v506, %v506
    %v668 = vmul.f32 %v509, %v509
    %v669 = vmul.f32 %v511, %v511
    %v670 = vmul.f32 %v514, %v514
    %v671 = vmul.f32 %v516, %v516
    %v672 = vmul.f32 %v519, %v519
    %v673 = vmul.f32 %v521, %v521
    %v674 = vmul.f32 %v524, %v524
    %v675 = vmul.f32 %v526, %v526
    %v676 = vmul.f32 %v529, %v529
    %v677 = vmul.f32 %v531, %v531
    %v678 = vmul.f32 %v534, %v534
    %v679 = vmul.f32 %v536, %v536
    %v680 = vmul.f32 %v539, %v539
    %v681 = vmul.f32 %v541, %v541
    %v682 = vmul.f32 %v544, %v544
    %v683 = vmul.f32 %v546, %v546
    %v684 = vadd.f32 %v620, %v621
    %v685 = vadd.f32 %v684, %v622
    %v686 = vadd.f32 %v685, %v623
    %v687 = vadd.f32 %v686, %v624
    %v688 = vadd.f32 %v687, %v625
    %v689 = vadd.f32 %v688, %v626
    %v690 = vadd.f32 %v689, %v627
    %v691 = vadd.f32 %v690, %v628
    %v692 = vadd.f32 %v691, %v629
    %v693 = vadd.f32 %v692, %v630
    %v694 = vadd.f32 %v693, %v631
    %v695 = vadd.f32 %v694, %v632
    %v696 = vadd.f32 %v695, %v633
    %v697 = vadd.f32 %v696, %v634
    %v698 = vadd.f32 %v697, %v635
    %v699 = vadd.f32 %v698, %v636
    %v700 = vadd.f32 %v699, %v637
    %v701 = vadd.f32 %v700, %v638
    %v702 = vadd.f32 %v701, %v639
    %v703 = vadd.f32 %v702, %v640
    %v704 = vadd.f32 %v703, %v641
    %v705 = vadd.f32 %v704, %v642
    %v706 = vadd.f32 %v705, %v643
    %v707 = vadd.f32 %v706, %v644
    %v708 = vadd.f32 %v707, %v645
    %v709 = vadd.f32 %v708, %v646
    %v710 = vadd.f32 %v709, %v647
    %v711 = vadd.f32 %v710, %v648
    %v712 = vadd.f32 %v711, %v649
    %v713 = vadd.f32 %v712, %v650
    %v714 = vadd.f32 %v713, %v651
    %v715 = vadd.f32 %v714, %v652
    %v716 = vadd.f32 %v715, %v653
    %v717 = vadd.f32 %v716, %v654
    %v718 = vadd.f32 %v717, %v655
    %v719 = vadd.f32 %v718, %v656
    %v720 = vadd.f32 %v719, %v657
    %v721 = vadd.f32 %v720, %v658
    %v722 = vadd.f32 %v721, %v659
    %v723 = vadd.f32 %v722, %v660
    %v724 = vadd.f32 %v723, %v661
    %v725 = vadd.f32 %v724, %v662
    %v726 = vadd.f32 %v725, %v663
    %v727 = vadd.f32 %v726, %v664
    %v728 = vadd.f32 %v727, %v665
    %v729 = vadd.f32 %v728, %v666
    %v730 = vadd.f32 %v729, %v667
    %v731 = vadd.f32 %v730, %v668
    %v732 = vadd.f32 %v731, %v669
    %v733 = vadd.f32 %v732, %v670
    %v734 = vadd.f32 %v733, %v671
    %v735 = vadd.f32 %v734, %v672
    %v736 = vadd.f32 %v735, %v673
    %v737 = vadd.f32 %v736, %v674
    %v738 = vadd.f32 %v737, %v675
    %v739 = vadd.f32 %v738, %v676
    %v740 = vadd.f32 %v739, %v677
    %v741 = vadd.f32 %v740, %v678
    %v742 = vadd.f32 %v741, %v679
    %v743 = vadd.f32 %v742, %v680
    %v744 = vadd.f32 %v743, %v681
    %v745 = vadd.f32 %v744, %v682
    %v746 = vadd.f32 %v745, %v683
    %v747 = vrot.slane %v746, 4
    %v748 = vadd.f32 %v746, %v747
    %v749 = vrot.slane %v748, 2
    %v750 = vadd.f32 %v748, %v749
    %v751 = vrot.slane %v750, 1
    %v752 = vadd.f32 %v750, %v751
    %v753 = vmul.f32 %v752, 0.001953125
    %v754 = vmul.f32 %v619, %v619
    %v755 = vsub.f32 %v753, %v754
    %v756 = vadd.f32 %v755, 1e-05
    %v757 = vrsqrt.pop %v756
    %v758 = vmul.f32 %v757, %v756
    %v759 = vmul.f32 %v758, %v757
    %v760 = vmul.f32 0.5, %v759
    %v761 = vsub.f32 1.5, %v760
    %v762 = vmul.f32 %v757, %v761
    %vm763 = vweird.f32 %v756
    %vm764 = vweird.f32 %v757
    %vm765 = vmor %vm763, %vm764
    %v766 = vsel %vm765, %v757, %v762
    %v767 = vmul.f32 %v548, %v766
    %v768 = vmul.f32 %v619, %v767
    %v769 = vsub.f32 %v549, %v768
    %v771 = vperm.slane %v767, 0
    %v773 = vmul.f32 %v389, %v771
    %v774 = vmul.f32 %v391, %v771
    %v775 = vmul.f32 %v394, %v771
    %v776 = vmul.f32 %v396, %v771
    %v777 = vmul.f32 %v399, %v771
    %v778 = vmul.f32 %v401, %v771
    %v779 = vmul.f32 %v404, %v771
    %v780 = vmul.f32 %v406, %v771
    %v781 = vmul.f32 %v409, %v771
    %v782 = vmul.f32 %v411, %v771
    %v783 = vmul.f32 %v414, %v771
    %v784 = vmul.f32 %v416, %v771
    %v785 = vmul.f32 %v419, %v771
    %v786 = vmul.f32 %v421, %v771
    %v787 = vmul.f32 %v424, %v771
    %v788 = vmul.f32 %v426, %v771
    %v789 = vmul.f32 %v429, %v771
    %v790 = vmul.f32 %v431, %v771
    %v791 = vmul.f32 %v434, %v771
    %v792 = vmul.f32 %v436, %v771
    %v793 = vmul.f32 %v439, %v771
    %v794 = vmul.f32 %v441, %v771
    %v795 = vmul.f32 %v444, %v771
    %v796 = vmul.f32 %v446, %v771
    %v797 = vmul.f32 %v449, %v771
    %v798 = vmul.f32 %v451, %v771
    %v799 = vmul.f32 %v454, %v771
    %v800 = vmul.f32 %v456, %v771
    %v801 = vmul.f32 %v459, %v771
    %v802 = vmul.f32 %v461, %v771
    %v803 = vmul.f32 %v464, %v771
    %v804 = vmul.f32 %v466, %v771
    %v805 = vmul.f32 %v469, %v771
    %v806 = vmul.f32 %v471, %v771
    %v807 = vmul.f32 %v474, %v771
    %v808 = vmul.f32 %v476, %v771
    %v809 = vmul.f32 %v479, %v771
    %v810 = vmul.f32 %v481, %v771
    %v811 = vmul.f32 %v484, %v771
    %v812 = vmul.f32 %v486, %v771
    %v813 = vmul.f32 %v489, %v771
    %v814 = vmul.f32 %v491, %v771
    %v815 = vmul.f32 %v494, %v771
    %v816 = vmul.f32 %v496, %v771
    %v817 = vmul.f32 %v499, %v771
    %v818 = vmul.f32 %v501, %v771
    %v819 = vmul.f32 %v504, %v771
    %v820 = vmul.f32 %v506, %v771
    %v821 = vmul.f32 %v509, %v771
    %v822 = vmul.f32 %v511, %v771
    %v823 = vmul.f32 %v514, %v771
    %v824 = vmul.f32 %v516, %v771
    %v825 = vmul.f32 %v519, %v771
    %v826 = vmul.f32 %v521, %v771
    %v827 = vmul.f32 %v524, %v771
    %v828 = vmul.f32 %v526, %v771
    %v829 = vmul.f32 %v529, %v771
    %v830 = vmul.f32 %v531, %v771
    %v831 = vmul.f32 %v534, %v771
    %v832 = vmul.f32 %v536, %v771
    %v833 = vmul.f32 %v539, %v771
    %v834 = vmul.f32 %v541, %v771
    %v835 = vmul.f32 %v544, %v771
    %v836 = vmul.f32 %v546, %v771
    %v838 = vperm.slane %v769, 0
    %v840 = vadd.f32 %v773, %v838
    %v841 = vadd.f32 %v774, %v838
    %v842 = vadd.f32 %v775, %v838
    %v843 = vadd.f32 %v776, %v838
    %v844 = vadd.f32 %v777, %v838
    %v845 = vadd.f32 %v778, %v838
    %v846 = vadd.f32 %v779, %v838
    %v847 = vadd.f32 %v780, %v838
    %v848 = vadd.f32 %v781, %v838
    %v849 = vadd.f32 %v782, %v838
    %v850 = vadd.f32 %v783, %v838
    %v851 = vadd.f32 %v784, %v838
    %v852 = vadd.f32 %v785, %v838
    %v853 = vadd.f32 %v786, %v838
    %v854 = vadd.f32 %v787, %v838
    %v855 = vadd.f32 %v788, %v838
    %v856 = vadd.f32 %v789, %v838
    %v857 = vadd.f32 %v790, %v838
    %v858 = vadd.f32 %v791, %v838
    %v859 = vadd.f32 %v792, %v838
    %v860 = vadd.f32 %v793, %v838
    %v861 = vadd.f32 %v794, %v838
    %v862 = vadd.f32 %v795, %v838
    %v863 = vadd.f32 %v796, %v838
    %v864 = vadd.f32 %v797, %v838
    %v865 = vadd.f32 %v798, %v838
    %v866 = vadd.f32 %v799, %v838
    %v867 = vadd.f32 %v800, %v838
    %v868 = vadd.f32 %v801, %v838
    %v869 = vadd.f32 %v802, %v838
    %v870 = vadd.f32 %v803, %v838
    %v871 = vadd.f32 %v804, %v838
    %v872 = vadd.f32 %v805, %v838
    %v873 = vadd.f32 %v806, %v838
    %v874 = vadd.f32 %v807, %v838
    %v875 = vadd.f32 %v808, %v838
    %v876 = vadd.f32 %v809, %v838
    %v877 = vadd.f32 %v810, %v838
    %v878 = vadd.f32 %v811, %v838
    %v879 = vadd.f32 %v812, %v838
    %v880 = vadd.f32 %v813, %v838
    %v881 = vadd.f32 %v814, %v838
    %v882 = vadd.f32 %v815, %v838
    %v883 = vadd.f32 %v816, %v838
    %v884 = vadd.f32 %v817, %v838
    %v885 = vadd.f32 %v818, %v838
    %v886 = vadd.f32 %v819, %v838
    %v887 = vadd.f32 %v820, %v838
    %v888 = vadd.f32 %v821, %v838
    %v889 = vadd.f32 %v822, %v838
    %v890 = vadd.f32 %v823, %v838
    %v891 = vadd.f32 %v824, %v838
    %v892 = vadd.f32 %v825, %v838
    %v893 = vadd.f32 %v826, %v838
    %v894 = vadd.f32 %v827, %v838
    %v895 = vadd.f32 %v828, %v838
    %v896 = vadd.f32 %v829, %v838
    %v897 = vadd.f32 %v830, %v838
    %v898 = vadd.f32 %v831, %v838
    %v899 = vadd.f32 %v832, %v838
    %v900 = vadd.f32 %v833, %v838
    %v901 = vadd.f32 %v834, %v838
    %v902 = vadd.f32 %v835, %v838
    %v903 = vadd.f32 %v836, %v838
    %v904 = vmax.f32 %v840, 0.0
    %v905 = vmax.f32 %v841, 0.0
    %v906 = vmax.f32 %v842, 0.0
    %v907 = vmax.f32 %v843, 0.0
    %v908 = vmax.f32 %v844, 0.0
    %v909 = vmax.f32 %v845, 0.0
    %v910 = vmax.f32 %v846, 0.0
    %v911 = vmax.f32 %v847, 0.0
    %v912 = vmax.f32 %v848, 0.0
    %v913 = vmax.f32 %v849, 0.0
    %v914 = vmax.f32 %v850, 0.0
    %v915 = vmax.f32 %v851, 0.0
    %v916 = vmax.f32 %v852, 0.0
    %v917 = vmax.f32 %v853, 0.0
    %v918 = vmax.f32 %v854, 0.0
    %v919 = vmax.f32 %v855, 0.0
    %v920 = vmax.f32 %v856, 0.0
    %v921 = vmax.f32 %v857, 0.0
    %v922 = vmax.f32 %v858, 0.0
    %v923 = vmax.f32 %v859, 0.0
    %v924 = vmax.f32 %v860, 0.0
    %v925 = vmax.f32 %v861, 0.0
    %v926 = vmax.f32 %v862, 0.0
    %v927 = vmax.f32 %v863, 0.0
    %v928 = vmax.f32 %v864, 0.0
    %v929 = vmax.f32 %v865, 0.0
    %v930 = vmax.f32 %v866, 0.0
    %v931 = vmax.f32 %v867, 0.0
    %v932 = vmax.f32 %v868, 0.0
    %v933 = vmax.f32 %v869, 0.0
    %v934 = vmax.f32 %v870, 0.0
    %v935 = vmax.f32 %v871, 0.0
    %v936 = vmax.f32 %v872, 0.0
    %v937 = vmax.f32 %v873, 0.0
    %v938 = vmax.f32 %v874, 0.0
    %v939 = vmax.f32 %v875, 0.0
    %v940 = vmax.f32 %v876, 0.0
    %v941 = vmax.f32 %v877, 0.0
    %v942 = vmax.f32 %v878, 0.0
    %v943 = vmax.f32 %v879, 0.0
    %v944 = vmax.f32 %v880, 0.0
    %v945 = vmax.f32 %v881, 0.0
    %v946 = vmax.f32 %v882, 0.0
    %v947 = vmax.f32 %v883, 0.0
    %v948 = vmax.f32 %v884, 0.0
    %v949 = vmax.f32 %v885, 0.0
    %v950 = vmax.f32 %v886, 0.0
    %v951 = vmax.f32 %v887, 0.0
    %v952 = vmax.f32 %v888, 0.0
    %v953 = vmax.f32 %v889, 0.0
    %v954 = vmax.f32 %v890, 0.0
    %v955 = vmax.f32 %v891, 0.0
    %v956 = vmax.f32 %v892, 0.0
    %v957 = vmax.f32 %v893, 0.0
    %v958 = vmax.f32 %v894, 0.0
    %v959 = vmax.f32 %v895, 0.0
    %v960 = vmax.f32 %v896, 0.0
    %v961 = vmax.f32 %v897, 0.0
    %v962 = vmax.f32 %v898, 0.0
    %v963 = vmax.f32 %v899, 0.0
    %v964 = vmax.f32 %v900, 0.0
    %v965 = vmax.f32 %v901, 0.0
    %v966 = vmax.f32 %v902, 0.0
    %v967 = vmax.f32 %v903, 0.0
    %v968 = vpack.c.bf16 %v904, %v904
    %v969 = vpack.c.bf16 %v905, %v905
    %v970 = vpack.c.bf16 %v906, %v906
    %v971 = vpack.c.bf16 %v907, %v907
    %v972 = vpack.c.bf16 %v908, %v908
    %v973 = vpack.c.bf16 %v909, %v909
    %v974 = vpack.c.bf16 %v910, %v910
    %v975 = vpack.c.bf16 %v911, %v911
    %v976 = vpack.c.bf16 %v912, %v912
    %v977 = vpack.c.bf16 %v913, %v913
    %v978 = vpack.c.bf16 %v914, %v914
    %v979 = vpack.c.bf16 %v915, %v915
    %v980 = vpack.c.bf16 %v916, %v916
    %v981 = vpack.c.bf16 %v917, %v917
    %v982 = vpack.c.bf16 %v918, %v918
    %v983 = vpack.c.bf16 %v919, %v919
    %v984 = vpack.c.bf16 %v920, %v920
    %v985 = vpack.c.bf16 %v921, %v921
    %v986 = vpack.c.bf16 %v922, %v922
    %v987 = vpack.c.bf16 %v923, %v923
    %v988 = vpack.c.bf16 %v924, %v924
    %v989 = vpack.c.bf16 %v925, %v925
    %v990 = vpack.c.bf16 %v926, %v926
    %v991 = vpack.c.bf16 %v927, %v927
    %v992 = vpack.c.bf16 %v928, %v928
    %v993 = vpack.c.bf16 %v929, %v929
    %v994 = vpack.c.bf16 %v930, %v930
    %v995 = vpack.c.bf16 %v931, %v931
    %v996 = vpack.c.bf16 %v932, %v932
    %v997 = vpack.c.bf16 %v933, %v933
    %v998 = vpack.c.bf16 %v934, %v934
    %v999 = vpack.c.bf16 %v935, %v935
    %v1000 = vpack.c.bf16 %v936, %v936
    %v1001 = vpack.c.bf16 %v937, %v937
    %v1002 = vpack.c.bf16 %v938, %v938
    %v1003 = vpack.c.bf16 %v939, %v939
    %v1004 = vpack.c.bf16 %v940, %v940
    %v1005 = vpack.c.bf16 %v941, %v941
    %v1006 = vpack.c.bf16 %v942, %v942
    %v1007 = vpack.c.bf16 %v943, %v943
    %v1008 = vpack.c.bf16 %v944, %v944
    %v1009 = vpack.c.bf16 %v945, %v945
    %v1010 = vpack.c.bf16 %v946, %v946
    %v1011 = vpack.c.bf16 %v947, %v947
    %v1012 = vpack.c.bf16 %v948, %v948
    %v1013 = vpack.c.bf16 %v949, %v949
    %v1014 = vpack.c.bf16 %v950, %v950
    %v1015 = vpack.c.bf16 %v951, %v951
    %v1016 = vpack.c.bf16 %v952, %v952
    %v1017 = vpack.c.bf16 %v953, %v953
    %v1018 = vpack.c.bf16 %v954, %v954
    %v1019 = vpack.c.bf16 %v955, %v955
    %v1020 = vpack.c.bf16 %v956, %v956
    %v1021 = vpack.c.bf16 %v957, %v957
    %v1022 = vpack.c.bf16 %v958, %v958
    %v1023 = vpack.c.bf16 %v959, %v959
    %v1024 = vpack.c.bf16 %v960, %v960
    %v1025 = vpack.c.bf16 %v961, %v961
    %v1026 = vpack.c.bf16 %v962, %v962
    %v1027 = vpack.c.bf16 %v963, %v963
    %v1028 = vpack.c.bf16 %v964, %v964
    %v1029 = vpack.c.bf16 %v965, %v965
    %v1030 = vpack.c.bf16 %v966, %v966
    %v1031 = vpack.c.bf16 %v967, %v967
    %1032 = vst [vmem:[#allocation2] sm:$0xf] %v968
    %1033 = vst [vmem:[#allocation2 + $0x4] sm:$0xf] %v969
    %1034 = vst [vmem:[#allocation2 + $0x8] sm:$0xf] %v970
    %1035 = vst [vmem:[#allocation2 + $0xc] sm:$0xf] %v971
    %1036 = vst [vmem:[#allocation2 + $0x10] sm:$0xf] %v972
    %1037 = vst [vmem:[#allocation2 + $0x14] sm:$0xf] %v973
    %1038 = vst [vmem:[#allocation2 + $0x18] sm:$0xf] %v974
    %1039 = vst [vmem:[#allocation2 + $0x1c] sm:$0xf] %v975
    %1040 = vst [vmem:[#allocation2 + $0x20] sm:$0xf] %v976
    %1041 = vst [vmem:[#allocation2 + $0x24] sm:$0xf] %v977
    %1042 = vst [vmem:[#allocation2 + $0x28] sm:$0xf] %v978
    %1043 = vst [vmem:[#allocation2 + $0x2c] sm:$0xf] %v979
    %1044 = vst [vmem:[#allocation2 + $0x30] sm:$0xf] %v980
    %1045 = vst [vmem:[#allocation2 + $0x34] sm:$0xf] %v981
    %1046 = vst [vmem:[#allocation2 + $0x38] sm:$0xf] %v982
    %1047 = vst [vmem:[#allocation2 + $0x3c] sm:$0xf] %v983
    %1048 = vst [vmem:[#allocation2 + $0x40] sm:$0xf] %v984
    %1049 = vst [vmem:[#allocation2 + $0x44] sm:$0xf] %v985
    %1050 = vst [vmem:[#allocation2 + $0x48] sm:$0xf] %v986
    %1051 = vst [vmem:[#allocation2 + $0x4c] sm:$0xf] %v987
    %1052 = vst [vmem:[#allocation2 + $0x50] sm:$0xf] %v988
    %1053 = vst [vmem:[#allocation2 + $0x54] sm:$0xf] %v989
    %1054 = vst [vmem:[#allocation2 + $0x58] sm:$0xf] %v990
    %1055 = vst [vmem:[#allocation2 + $0x5c] sm:$0xf] %v991
    %1056 = vst [vmem:[#allocation2 + $0x60] sm:$0xf] %v992
    %1057 = vst [vmem:[#allocation2 + $0x64] sm:$0xf] %v993
    %1058 = vst [vmem:[#allocation2 + $0x68] sm:$0xf] %v994
    %1059 = vst [vmem:[#allocation2 + $0x6c] sm:$0xf] %v995
    %1060 = vst [vmem:[#allocation2 + $0x70] sm:$0xf] %v996
    %1061 = vst [vmem:[#allocation2 + $0x74] sm:$0xf] %v997
    %1062 = vst [vmem:[#allocation2 + $0x78] sm:$0xf] %v998
    %1063 = vst [vmem:[#allocation2 + $0x7c] sm:$0xf] %v999
    %1064 = vst [vmem:[#allocation2 + $0x80] sm:$0xf] %v1000
    %1065 = vst [vmem:[#allocation2 + $0x84] sm:$0xf] %v1001
    %1066 = vst [vmem:[#allocation2 + $0x88] sm:$0xf] %v1002
    %1067 = vst [vmem:[#allocation2 + $0x8c] sm:$0xf] %v1003
    %1068 = vst [vmem:[#allocation2 + $0x90] sm:$0xf] %v1004
    %1069 = vst [vmem:[#allocation2 + $0x94] sm:$0xf] %v1005
    %1070 = vst [vmem:[#allocation2 + $0x98] sm:$0xf] %v1006
    %1071 = vst [vmem:[#allocation2 + $0x9c] sm:$0xf] %v1007
    %1072 = vst [vmem:[#allocation2 + $0xa0] sm:$0xf] %v1008
    %1073 = vst [vmem:[#allocation2 + $0xa4] sm:$0xf] %v1009
    %1074 = vst [vmem:[#allocation2 + $0xa8] sm:$0xf] %v1010
    %1075 = vst [vmem:[#allocation2 + $0xac] sm:$0xf] %v1011
    %1076 = vst [vmem:[#allocation2 + $0xb0] sm:$0xf] %v1012
    %1077 = vst [vmem:[#allocation2 + $0xb4] sm:$0xf] %v1013
    %1078 = vst [vmem:[#allocation2 + $0xb8] sm:$0xf] %v1014
    %1079 = vst [vmem:[#allocation2 + $0xbc] sm:$0xf] %v1015
    %1080 = vst [vmem:[#allocation2 + $0xc0] sm:$0xf] %v1016
    %1081 = vst [vmem:[#allocation2 + $0xc4] sm:$0xf] %v1017
    %1082 = vst [vmem:[#allocation2 + $0xc8] sm:$0xf] %v1018
    %1083 = vst [vmem:[#allocation2 + $0xcc] sm:$0xf] %v1019
    %1084 = vst [vmem:[#allocation2 + $0xd0] sm:$0xf] %v1020
    %1085 = vst [vmem:[#allocation2 + $0xd4] sm:$0xf] %v1021
    %1086 = vst [vmem:[#allocation2 + $0xd8] sm:$0xf] %v1022
    %1087 = vst [vmem:[#allocation2 + $0xdc] sm:$0xf] %v1023
    %1088 = vst [vmem:[#allocation2 + $0xe0] sm:$0xf] %v1024
    %1089 = vst [vmem:[#allocation2 + $0xe4] sm:$0xf] %v1025
    %1090 = vst [vmem:[#allocation2 + $0xe8] sm:$0xf] %v1026
    %1091 = vst [vmem:[#allocation2 + $0xec] sm:$0xf] %v1027
    %1092 = vst [vmem:[#allocation2 + $0xf0] sm:$0xf] %v1028
    %1093 = vst [vmem:[#allocation2 + $0xf4] sm:$0xf] %v1029
    %1094 = vst [vmem:[#allocation2 + $0xf8] sm:$0xf] %v1030
    %1095 = vst [vmem:[#allocation2 + $0xfc] sm:$0xf] %v1031
    %v1096 = vld [vmem:[%s4] sm:$0xf]
    %v1097 = vld [vmem:[%s4 + $0x4] sm:$0xf]
    %v1098 = vld [vmem:[%s4 + $0x8] sm:$0xf]
    %v1099 = vld [vmem:[%s4 + $0xc] sm:$0xf]
    %v1100 = vld [vmem:[%s4 + $0x10] sm:$0xf]
    %v1101 = vld [vmem:[%s4 + $0x14] sm:$0xf]
    %v1102 = vld [vmem:[%s4 + $0x18] sm:$0xf]
    %v1103 = vld [vmem:[%s4 + $0x1c] sm:$0xf]
    %v1104 = vld [vmem:[%s4 + $0x20] sm:$0xf]
    %v1105 = vld [vmem:[%s4 + $0x24] sm:$0xf]
    %v1106 = vld [vmem:[%s4 + $0x28] sm:$0xf]
    %v1107 = vld [vmem:[%s4 + $0x2c] sm:$0xf]
    %v1108 = vld [vmem:[%s4 + $0x30] sm:$0xf]
    %v1109 = vld [vmem:[%s4 + $0x34] sm:$0xf]
    %v1110 = vld [vmem:[%s4 + $0x38] sm:$0xf]
    %v1111 = vld [vmem:[%s4 + $0x3c] sm:$0xf]
    %v1112 = vld [vmem:[%s4 + $0x40] sm:$0xf]
    %v1113 = vld [vmem:[%s4 + $0x44] sm:$0xf]
    %v1114 = vld [vmem:[%s4 + $0x48] sm:$0xf]
    %v1115 = vld [vmem:[%s4 + $0x4c] sm:$0xf]
    %v1116 = vld [vmem:[%s4 + $0x50] sm:$0xf]
    %v1117 = vld [vmem:[%s4 + $0x54] sm:$0xf]
    %v1118 = vld [vmem:[%s4 + $0x58] sm:$0xf]
    %v1119 = vld [vmem:[%s4 + $0x5c] sm:$0xf]
    %v1120 = vld [vmem:[%s4 + $0x60] sm:$0xf]
    %v1121 = vld [vmem:[%s4 + $0x64] sm:$0xf]
    %v1122 = vld [vmem:[%s4 + $0x68] sm:$0xf]
    %v1123 = vld [vmem:[%s4 + $0x6c] sm:$0xf]
    %v1124 = vld [vmem:[%s4 + $0x70] sm:$0xf]
    %v1125 = vld [vmem:[%s4 + $0x74] sm:$0xf]
    %v1126 = vld [vmem:[%s4 + $0x78] sm:$0xf]
    %v1127 = vld [vmem:[%s4 + $0x7c] sm:$0xf]
    %v1128 = vld [vmem:[%s4 + $0x80] sm:$0xf]
    %v1129 = vld [vmem:[%s4 + $0x84] sm:$0xf]
    %v1130 = vld [vmem:[%s4 + $0x88] sm:$0xf]
    %v1131 = vld [vmem:[%s4 + $0x8c] sm:$0xf]
    %v1132 = vld [vmem:[%s4 + $0x90] sm:$0xf]
    %v1133 = vld [vmem:[%s4 + $0x94] sm:$0xf]
    %v1134 = vld [vmem:[%s4 + $0x98] sm:$0xf]
    %v1135 = vld [vmem:[%s4 + $0x9c] sm:$0xf]
    %v1136 = vld [vmem:[%s4 + $0xa0] sm:$0xf]
    %v1137 = vld [vmem:[%s4 + $0xa4] sm:$0xf]
    %v1138 = vld [vmem:[%s4 + $0xa8] sm:$0xf]
    %v1139 = vld [vmem:[%s4 + $0xac] sm:$0xf]
    %v1140 = vld [vmem:[%s4 + $0xb0] sm:$0xf]
    %v1141 = vld [vmem:[%s4 + $0xb4] sm:$0xf]
    %v1142 = vld [vmem:[%s4 + $0xb8] sm:$0xf]
    %v1143 = vld [vmem:[%s4 + $0xbc] sm:$0xf]
    %v1144 = vld [vmem:[%s4 + $0xc0] sm:$0xf]
    %v1145 = vld [vmem:[%s4 + $0xc4] sm:$0xf]
    %v1146 = vld [vmem:[%s4 + $0xc8] sm:$0xf]
    %v1147 = vld [vmem:[%s4 + $0xcc] sm:$0xf]
    %v1148 = vld [vmem:[%s4 + $0xd0] sm:$0xf]
    %v1149 = vld [vmem:[%s4 + $0xd4] sm:$0xf]
    %v1150 = vld [vmem:[%s4 + $0xd8] sm:$0xf]
    %v1151 = vld [vmem:[%s4 + $0xdc] sm:$0xf]
    %v1152 = vld [vmem:[%s4 + $0xe0] sm:$0xf]
    %v1153 = vld [vmem:[%s4 + $0xe4] sm:$0xf]
    %v1154 = vld [vmem:[%s4 + $0xe8] sm:$0xf]
    %v1155 = vld [vmem:[%s4 + $0xec] sm:$0xf]
    %v1156 = vld [vmem:[%s4 + $0xf0] sm:$0xf]
    %v1157 = vld [vmem:[%s4 + $0xf4] sm:$0xf]
    %v1158 = vld [vmem:[%s4 + $0xf8] sm:$0xf]
    %v1159 = vld [vmem:[%s4 + $0xfc] sm:$0xf]
    %v1160 = vld [vmem:[%s5] sm:$0x3]
    %v1225 = vunpack.c.l.b16 %v1096
    %v1226 = vunpack.c.l.b16 %v1097
    %v1227 = vunpack.c.l.b16 %v1098
    %v1228 = vunpack.c.l.b16 %v1099
    %v1229 = vunpack.c.l.b16 %v1100
    %v1230 = vunpack.c.l.b16 %v1101
    %v1231 = vunpack.c.l.b16 %v1102
    %v1232 = vunpack.c.l.b16 %v1103
    %v1233 = vunpack.c.l.b16 %v1104
    %v1234 = vunpack.c.l.b16 %v1105
    %v1235 = vunpack.c.l.b16 %v1106
    %v1236 = vunpack.c.l.b16 %v1107
    %v1237 = vunpack.c.l.b16 %v1108
    %v1238 = vunpack.c.l.b16 %v1109
    %v1239 = vunpack.c.l.b16 %v1110
    %v1240 = vunpack.c.l.b16 %v1111
    %v1241 = vunpack.c.l.b16 %v1112
    %v1242 = vunpack.c.l.b16 %v1113
    %v1243 = vunpack.c.l.b16 %v1114
    %v1244 = vunpack.c.l.b16 %v1115
    %v1245 = vunpack.c.l.b16 %v1116
    %v1246 = vunpack.c.l.b16 %v1117
    %v1247 = vunpack.c.l.b16 %v1118
    %v1248 = vunpack.c.l.b16 %v1119
    %v1249 = vunpack.c.l.b16 %v1120
    %v1250 = vunpack.c.l.b16 %v1121
    %v1251 = vunpack.c.l.b16 %v1122
    %v1252 = vunpack.c.l.b16 %v1123
    %v1253 = vunpack.c.l.b16 %v1124
    %v1254 = vunpack.c.l.b16 %v1125
    %v1255 = vunpack.c.l.b16 %v1126
    %v1256 = vunpack.c.l.b16 %v1127
    %v1257 = vunpack.c.l.b16 %v1128
    %v1258 = vunpack.c.l.b16 %v1129
    %v1259 = vunpack.c.l.b16 %v1130
    %v1260 = vunpack.c.l.b16 %v1131
    %v1261 = vunpack.c.l.b16 %v1132
    %v1262 = vunpack.c.l.b16 %v1133
    %v1263 = vunpack.c.l.b16 %v1134
    %v1264 = vunpack.c.l.b16 %v1135
    %v1265 = vunpack.c.l.b16 %v1136
    %v1266 = vunpack.c.l.b16 %v1137
    %v1267 = vunpack.c.l.b16 %v1138
    %v1268 = vunpack.c.l.b16 %v1139
    %v1269 = vunpack.c.l.b16 %v1140
    %v1270 = vunpack.c.l.b16 %v1141
    %v1271 = vunpack.c.l.b16 %v1142
    %v1272 = vunpack.c.l.b16 %v1143
    %v1273 = vunpack.c.l.b16 %v1144
    %v1274 = vunpack.c.l.b16 %v1145
    %v1275 = vunpack.c.l.b16 %v1146
    %v1276 = vunpack.c.l.b16 %v1147
    %v1277 = vunpack.c.l.b16 %v1148
    %v1278 = vunpack.c.l.b16 %v1149
    %v1279 = vunpack.c.l.b16 %v1150
    %v1280 = vunpack.c.l.b16 %v1151
    %v1281 = vunpack.c.l.b16 %v1152
    %v1282 = vunpack.c.l.b16 %v1153
    %v1283 = vunpack.c.l.b16 %v1154
    %v1284 = vunpack.c.l.b16 %v1155
    %v1285 = vunpack.c.l.b16 %v1156
    %v1286 = vunpack.c.l.b16 %v1157
    %v1287 = vunpack.c.l.b16 %v1158
    %v1288 = vunpack.c.l.b16 %v1159
    %v1289 = vpack.c.b16 %v1226, %v1225
    %v1290 = vpack.c.b16 %v1228, %v1227
    %v1291 = vpack.c.b16 %v1230, %v1229
    %v1292 = vpack.c.b16 %v1232, %v1231
    %v1293 = vpack.c.b16 %v1234, %v1233
    %v1294 = vpack.c.b16 %v1236, %v1235
    %v1295 = vpack.c.b16 %v1238, %v1237
    %v1296 = vpack.c.b16 %v1240, %v1239
    %v1297 = vpack.c.b16 %v1242, %v1241
    %v1298 = vpack.c.b16 %v1244, %v1243
    %v1299 = vpack.c.b16 %v1246, %v1245
    %v1300 = vpack.c.b16 %v1248, %v1247
    %v1301 = vpack.c.b16 %v1250, %v1249
    %v1302 = vpack.c.b16 %v1252, %v1251
    %v1303 = vpack.c.b16 %v1254, %v1253
    %v1304 = vpack.c.b16 %v1256, %v1255
    %v1305 = vpack.c.b16 %v1258, %v1257
    %v1306 = vpack.c.b16 %v1260, %v1259
    %v1307 = vpack.c.b16 %v1262, %v1261
    %v1308 = vpack.c.b16 %v1264, %v1263
    %v1309 = vpack.c.b16 %v1266, %v1265
    %v1310 = vpack.c.b16 %v1268, %v1267
    %v1311 = vpack.c.b16 %v1270, %v1269
    %v1312 = vpack.c.b16 %v1272, %v1271
    %v1313 = vpack.c.b16 %v1274, %v1273
    %v1314 = vpack.c.b16 %v1276, %v1275
    %v1315 = vpack.c.b16 %v1278, %v1277
    %v1316 = vpack.c.b16 %v1280, %v1279
    %v1317 = vpack.c.b16 %v1282, %v1281
    %v1318 = vpack.c.b16 %v1284, %v1283
    %v1319 = vpack.c.b16 %v1286, %v1285
    %v1320 = vpack.c.b16 %v1288, %v1287
    %vm1321 = vcmask 31744
    %v1323 = vsel %vm1321, %v1289, 0
    %v1326 = vsel %vm1321, %v1290, 0
    %v1329 = vsel %vm1321, %v1291, 0
    %v1332 = vsel %vm1321, %v1292, 0
    %v1335 = vsel %vm1321, %v1293, 0
    %v1338 = vsel %vm1321, %v1294, 0
    %v1341 = vsel %vm1321, %v1295, 0
    %v1344 = vsel %vm1321, %v1296, 0
    %v1347 = vsel %vm1321, %v1297, 0
    %v1350 = vsel %vm1321, %v1298, 0
    %v1353 = vsel %vm1321, %v1299, 0
    %v1356 = vsel %vm1321, %v1300, 0
    %v1359 = vsel %vm1321, %v1301, 0
    %v1362 = vsel %vm1321, %v1302, 0
    %v1365 = vsel %vm1321, %v1303, 0
    %v1368 = vsel %vm1321, %v1304, 0
    %v1371 = vsel %vm1321, %v1305, 0
    %v1374 = vsel %vm1321, %v1306, 0
    %v1377 = vsel %vm1321, %v1307, 0
    %v1380 = vsel %vm1321, %v1308, 0
    %v1383 = vsel %vm1321, %v1309, 0
    %v1386 = vsel %vm1321, %v1310, 0
    %v1389 = vsel %vm1321, %v1311, 0
    %v1392 = vsel %vm1321, %v1312, 0
    %v1395 = vsel %vm1321, %v1313, 0
    %v1398 = vsel %vm1321, %v1314, 0
    %v1401 = vsel %vm1321, %v1315, 0
    %v1404 = vsel %vm1321, %v1316, 0
    %v1407 = vsel %vm1321, %v1317, 0
    %v1410 = vsel %vm1321, %v1318, 0
    %v1413 = vsel %vm1321, %v1319, 0
    %v1416 = vsel %vm1321, %v1320, 0
    %v1419 = vsel %vm375, %v1160, 0
    %1421 = vmatpush.bf16.msra.mxu0 0
    %1422 = vmatpush.bf16.msra.mxu0 0
    %1423 = vmatpush.bf16.msra.mxu0 0
    %1424 = vmatpush.bf16.msra.mxu0 0
    %1425 = vmatpush.bf16.msra.mxu0 0
    %1426 = vmatpush.bf16.msra.mxu0 0
    %1427 = vmatpush.bf16.msra.mxu0 0
    %1428 = vmatpush.bf16.msra.mxu0 %v1419
    %1429 = vmatmul.bf16.gmra.mxu0 %v1323
    %v1430 = vpop.f32.mrf.mxu0
    %v1431 = vadd.f32 0.0, %v1430
    %v1432 = vpop.f32.mrf.mxu0
    %v1433 = vadd.f32 0.0, %v1432
    %1434 = vmatmul.bf16.gmra.mxu0 %v1326
    %v1435 = vpop.f32.mrf.mxu0
    %v1436 = vadd.f32 0.0, %v1435
    %v1437 = vpop.f32.mrf.mxu0
    %v1438 = vadd.f32 0.0, %v1437
    %1439 = vmatmul.bf16.gmra.mxu0 %v1329
    %v1440 = vpop.f32.mrf.mxu0
    %v1441 = vadd.f32 0.0, %v1440
    %v1442 = vpop.f32.mrf.mxu0
    %v1443 = vadd.f32 0.0, %v1442
    %1444 = vmatmul.bf16.gmra.mxu0 %v1332
    %v1445 = vpop.f32.mrf.mxu0
    %v1446 = vadd.f32 0.0, %v1445
    %v1447 = vpop.f32.mrf.mxu0
    %v1448 = vadd.f32 0.0, %v1447
    %1449 = vmatmul.bf16.gmra.mxu0 %v1335
    %v1450 = vpop.f32.mrf.mxu0
    %v1451 = vadd.f32 0.0, %v1450
    %v1452 = vpop.f32.mrf.mxu0
    %v1453 = vadd.f32 0.0, %v1452
    %1454 = vmatmul.bf16.gmra.mxu0 %v1338
    %v1455 = vpop.f32.mrf.mxu0
    %v1456 = vadd.f32 0.0, %v1455
    %v1457 = vpop.f32.mrf.mxu0
    %v1458 = vadd.f32 0.0, %v1457
    %1459 = vmatmul.bf16.gmra.mxu0 %v1341
    %v1460 = vpop.f32.mrf.mxu0
    %v1461 = vadd.f32 0.0, %v1460
    %v1462 = vpop.f32.mrf.mxu0
    %v1463 = vadd.f32 0.0, %v1462
    %1464 = vmatmul.bf16.gmra.mxu0 %v1344
    %v1465 = vpop.f32.mrf.mxu0
    %v1466 = vadd.f32 0.0, %v1465
    %v1467 = vpop.f32.mrf.mxu0
    %v1468 = vadd.f32 0.0, %v1467
    %1469 = vmatmul.bf16.gmra.mxu0 %v1347
    %v1470 = vpop.f32.mrf.mxu0
    %v1471 = vadd.f32 0.0, %v1470
    %v1472 = vpop.f32.mrf.mxu0
    %v1473 = vadd.f32 0.0, %v1472
    %1474 = vmatmul.bf16.gmra.mxu0 %v1350
    %v1475 = vpop.f32.mrf.mxu0
    %v1476 = vadd.f32 0.0, %v1475
    %v1477 = vpop.f32.mrf.mxu0
    %v1478 = vadd.f32 0.0, %v1477
    %1479 = vmatmul.bf16.gmra.mxu0 %v1353
    %v1480 = vpop.f32.mrf.mxu0
    %v1481 = vadd.f32 0.0, %v1480
    %v1482 = vpop.f32.mrf.mxu0
    %v1483 = vadd.f32 0.0, %v1482
    %1484 = vmatmul.bf16.gmra.mxu0 %v1356
    %v1485 = vpop.f32.mrf.mxu0
    %v1486 = vadd.f32 0.0, %v1485
    %v1487 = vpop.f32.mrf.mxu0
    %v1488 = vadd.f32 0.0, %v1487
    %1489 = vmatmul.bf16.gmra.mxu0 %v1359
    %v1490 = vpop.f32.mrf.mxu0
    %v1491 = vadd.f32 0.0, %v1490
    %v1492 = vpop.f32.mrf.mxu0
    %v1493 = vadd.f32 0.0, %v1492
    %1494 = vmatmul.bf16.gmra.mxu0 %v1362
    %v1495 = vpop.f32.mrf.mxu0
    %v1496 = vadd.f32 0.0, %v1495
    %v1497 = vpop.f32.mrf.mxu0
    %v1498 = vadd.f32 0.0, %v1497
    %1499 = vmatmul.bf16.gmra.mxu0 %v1365
    %v1500 = vpop.f32.mrf.mxu0
    %v1501 = vadd.f32 0.0, %v1500
    %v1502 = vpop.f32.mrf.mxu0
    %v1503 = vadd.f32 0.0, %v1502
    %1504 = vmatmul.bf16.gmra.mxu0 %v1368
    %v1505 = vpop.f32.mrf.mxu0
    %v1506 = vadd.f32 0.0, %v1505
    %v1507 = vpop.f32.mrf.mxu0
    %v1508 = vadd.f32 0.0, %v1507
    %1509 = vmatmul.bf16.gmra.mxu0 %v1371
    %v1510 = vpop.f32.mrf.mxu0
    %v1511 = vadd.f32 0.0, %v1510
    %v1512 = vpop.f32.mrf.mxu0
    %v1513 = vadd.f32 0.0, %v1512
    %1514 = vmatmul.bf16.gmra.mxu0 %v1374
    %v1515 = vpop.f32.mrf.mxu0
    %v1516 = vadd.f32 0.0, %v1515
    %v1517 = vpop.f32.mrf.mxu0
    %v1518 = vadd.f32 0.0, %v1517
    %1519 = vmatmul.bf16.gmra.mxu0 %v1377
    %v1520 = vpop.f32.mrf.mxu0
    %v1521 = vadd.f32 0.0, %v1520
    %v1522 = vpop.f32.mrf.mxu0
    %v1523 = vadd.f32 0.0, %v1522
    %1524 = vmatmul.bf16.gmra.mxu0 %v1380
    %v1525 = vpop.f32.mrf.mxu0
    %v1526 = vadd.f32 0.0, %v1525
    %v1527 = vpop.f32.mrf.mxu0
    %v1528 = vadd.f32 0.0, %v1527
    %1529 = vmatmul.bf16.gmra.mxu0 %v1383
    %v1530 = vpop.f32.mrf.mxu0
    %v1531 = vadd.f32 0.0, %v1530
    %v1532 = vpop.f32.mrf.mxu0
    %v1533 = vadd.f32 0.0, %v1532
    %1534 = vmatmul.bf16.gmra.mxu0 %v1386
    %v1535 = vpop.f32.mrf.mxu0
    %v1536 = vadd.f32 0.0, %v1535
    %v1537 = vpop.f32.mrf.mxu0
    %v1538 = vadd.f32 0.0, %v1537
    %1539 = vmatmul.bf16.gmra.mxu0 %v1389
    %v1540 = vpop.f32.mrf.mxu0
    %v1541 = vadd.f32 0.0, %v1540
    %v1542 = vpop.f32.mrf.mxu0
    %v1543 = vadd.f32 0.0, %v1542
    %1544 = vmatmul.bf16.gmra.mxu0 %v1392
    %v1545 = vpop.f32.mrf.mxu0
    %v1546 = vadd.f32 0.0, %v1545
    %v1547 = vpop.f32.mrf.mxu0
    %v1548 = vadd.f32 0.0, %v1547
    %1549 = vmatmul.bf16.gmra.mxu0 %v1395
    %v1550 = vpop.f32.mrf.mxu0
    %v1551 = vadd.f32 0.0, %v1550
    %v1552 = vpop.f32.mrf.mxu0
    %v1553 = vadd.f32 0.0, %v1552
    %1554 = vmatmul.bf16.gmra.mxu0 %v1398
    %v1555 = vpop.f32.mrf.mxu0
    %v1556 = vadd.f32 0.0, %v1555
    %v1557 = vpop.f32.mrf.mxu0
    %v1558 = vadd.f32 0.0, %v1557
    %1559 = vmatmul.bf16.gmra.mxu0 %v1401
    %v1560 = vpop.f32.mrf.mxu0
    %v1561 = vadd.f32 0.0, %v1560
    %v1562 = vpop.f32.mrf.mxu0
    %v1563 = vadd.f32 0.0, %v1562
    %1564 = vmatmul.bf16.gmra.mxu0 %v1404
    %v1565 = vpop.f32.mrf.mxu0
    %v1566 = vadd.f32 0.0, %v1565
    %v1567 = vpop.f32.mrf.mxu0
    %v1568 = vadd.f32 0.0, %v1567
    %1569 = vmatmul.bf16.gmra.mxu0 %v1407
    %v1570 = vpop.f32.mrf.mxu0
    %v1571 = vadd.f32 0.0, %v1570
    %v1572 = vpop.f32.mrf.mxu0
    %v1573 = vadd.f32 0.0, %v1572
    %1574 = vmatmul.bf16.gmra.mxu0 %v1410
    %v1575 = vpop.f32.mrf.mxu0
    %v1576 = vadd.f32 0.0, %v1575
    %v1577 = vpop.f32.mrf.mxu0
    %v1578 = vadd.f32 0.0, %v1577
    %1579 = vmatmul.bf16.gmra.mxu0 %v1413
    %v1580 = vpop.f32.mrf.mxu0
    %v1581 = vadd.f32 0.0, %v1580
    %v1582 = vpop.f32.mrf.mxu0
    %v1583 = vadd.f32 0.0, %v1582
    %1584 = vmatmul.bf16.gmra.mxu0 %v1416
    %v1585 = vpop.f32.mrf.mxu0
    %v1586 = vadd.f32 0.0, %v1585
    %v1587 = vpop.f32.mrf.mxu0
    %v1588 = vadd.f32 0.0, %v1587
    %1589 = vdwg.mxu0
    %v1590 = vld [vmem:[%s6] sm:$0x1]
    %v1591 = vld [vmem:[%s7] sm:$0x1]
    %v1592 = vadd.f32 %v1431, %v1433
    %v1593 = vadd.f32 %v1592, %v1436
    %v1594 = vadd.f32 %v1593, %v1438
    %v1595 = vadd.f32 %v1594, %v1441
    %v1596 = vadd.f32 %v1595, %v1443
    %v1597 = vadd.f32 %v1596, %v1446
    %v1598 = vadd.f32 %v1597, %v1448
    %v1599 = vadd.f32 %v1598, %v1451
    %v1600 = vadd.f32 %v1599, %v1453
    %v1601 = vadd.f32 %v1600, %v1456
    %v1602 = vadd.f32 %v1601, %v1458
    %v1603 = vadd.f32 %v1602, %v1461
    %v1604 = vadd.f32 %v1603, %v1463
    %v1605 = vadd.f32 %v1604, %v1466
    %v1606 = vadd.f32 %v1605, %v1468
    %v1607 = vadd.f32 %v1606, %v1471
    %v1608 = vadd.f32 %v1607, %v1473
    %v1609 = vadd.f32 %v1608, %v1476
    %v1610 = vadd.f32 %v1609, %v1478
    %v1611 = vadd.f32 %v1610, %v1481
    %v1612 = vadd.f32 %v1611, %v1483
    %v1613 = vadd.f32 %v1612, %v1486
    %v1614 = vadd.f32 %v1613, %v1488
    %v1615 = vadd.f32 %v1614, %v1491
    %v1616 = vadd.f32 %v1615, %v1493
    %v1617 = vadd.f32 %v1616, %v1496
    %v1618 = vadd.f32 %v1617, %v1498
    %v1619 = vadd.f32 %v1618, %v1501
    %v1620 = vadd.f32 %v1619, %v1503
    %v1621 = vadd.f32 %v1620, %v1506
    %v1622 = vadd.f32 %v1621, %v1508
    %v1623 = vadd.f32 %v1622, %v1511
    %v1624 = vadd.f32 %v1623, %v1513
    %v1625 = vadd.f32 %v1624, %v1516
    %v1626 = vadd.f32 %v1625, %v1518
    %v1627 = vadd.f32 %v1626, %v1521
    %v1628 = vadd.f32 %v1627, %v1523
    %v1629 = vadd.f32 %v1628, %v1526
    %v1630 = vadd.f32 %v1629, %v1528
    %v1631 = vadd.f32 %v1630, %v1531
    %v1632 = vadd.f32 %v1631, %v1533
    %v1633 = vadd.f32 %v1632, %v1536
    %v1634 = vadd.f32 %v1633, %v1538
    %v1635 = vadd.f32 %v1634, %v1541
    %v1636 = vadd.f32 %v1635, %v1543
    %v1637 = vadd.f32 %v1636, %v1546
    %v1638 = vadd.f32 %v1637, %v1548
    %v1639 = vadd.f32 %v1638, %v1551
    %v1640 = vadd.f32 %v1639, %v1553
    %v1641 = vadd.f32 %v1640, %v1556
    %v1642 = vadd.f32 %v1641, %v1558
    %v1643 = vadd.f32 %v1642, %v1561
    %v1644 = vadd.f32 %v1643, %v1563
    %v1645 = vadd.f32 %v1644, %v1566
    %v1646 = vadd.f32 %v1645, %v1568
    %v1647 = vadd.f32 %v1646, %v1571
    %v1648 = vadd.f32 %v1647, %v1573
    %v1649 = vadd.f32 %v1648, %v1576
    %v1650 = vadd.f32 %v1649, %v1578
    %v1651 = vadd.f32 %v1650, %v1581
    %v1652 = vadd.f32 %v1651, %v1583
    %v1653 = vadd.f32 %v1652, %v1586
    %v1654 = vadd.f32 %v1653, %v1588
    %v1655 = vrot.slane %v1654, 4
    %v1656 = vadd.f32 %v1654, %v1655
    %v1657 = vrot.slane %v1656, 2
    %v1658 = vadd.f32 %v1656, %v1657
    %v1659 = vrot.slane %v1658, 1
    %v1660 = vadd.f32 %v1658, %v1659
    %v1661 = vmul.f32 %v1660, 0.001953125
    %v1662 = vmul.f32 %v1431, %v1431
    %v1663 = vmul.f32 %v1433, %v1433
    %v1664 = vmul.f32 %v1436, %v1436
    %v1665 = vmul.f32 %v1438, %v1438
    %v1666 = vmul.f32 %v1441, %v1441
    %v1667 = vmul.f32 %v1443, %v1443
    %v1668 = vmul.f32 %v1446, %v1446
    %v1669 = vmul.f32 %v1448, %v1448
    %v1670 = vmul.f32 %v1451, %v1451
    %v1671 = vmul.f32 %v1453, %v1453
    %v1672 = vmul.f32 %v1456, %v1456
    %v1673 = vmul.f32 %v1458, %v1458
    %v1674 = vmul.f32 %v1461, %v1461
    %v1675 = vmul.f32 %v1463, %v1463
    %v1676 = vmul.f32 %v1466, %v1466
    %v1677 = vmul.f32 %v1468, %v1468
    %v1678 = vmul.f32 %v1471, %v1471
    %v1679 = vmul.f32 %v1473, %v1473
    %v1680 = vmul.f32 %v1476, %v1476
    %v1681 = vmul.f32 %v1478, %v1478
    %v1682 = vmul.f32 %v1481, %v1481
    %v1683 = vmul.f32 %v1483, %v1483
    %v1684 = vmul.f32 %v1486, %v1486
    %v1685 = vmul.f32 %v1488, %v1488
    %v1686 = vmul.f32 %v1491, %v1491
    %v1687 = vmul.f32 %v1493, %v1493
    %v1688 = vmul.f32 %v1496, %v1496
    %v1689 = vmul.f32 %v1498, %v1498
    %v1690 = vmul.f32 %v1501, %v1501
    %v1691 = vmul.f32 %v1503, %v1503
    %v1692 = vmul.f32 %v1506, %v1506
    %v1693 = vmul.f32 %v1508, %v1508
    %v1694 = vmul.f32 %v1511, %v1511
    %v1695 = vmul.f32 %v1513, %v1513
    %v1696 = vmul.f32 %v1516, %v1516
    %v1697 = vmul.f32 %v1518, %v1518
    %v1698 = vmul.f32 %v1521, %v1521
    %v1699 = vmul.f32 %v1523, %v1523
    %v1700 = vmul.f32 %v1526, %v1526
    %v1701 = vmul.f32 %v1528, %v1528
    %v1702 = vmul.f32 %v1531, %v1531
    %v1703 = vmul.f32 %v1533, %v1533
    %v1704 = vmul.f32 %v1536, %v1536
    %v1705 = vmul.f32 %v1538, %v1538
    %v1706 = vmul.f32 %v1541, %v1541
    %v1707 = vmul.f32 %v1543, %v1543
    %v1708 = vmul.f32 %v1546, %v1546
    %v1709 = vmul.f32 %v1548, %v1548
    %v1710 = vmul.f32 %v1551, %v1551
    %v1711 = vmul.f32 %v1553, %v1553
    %v1712 = vmul.f32 %v1556, %v1556
    %v1713 = vmul.f32 %v1558, %v1558
    %v1714 = vmul.f32 %v1561, %v1561
    %v1715 = vmul.f32 %v1563, %v1563
    %v1716 = vmul.f32 %v1566, %v1566
    %v1717 = vmul.f32 %v1568, %v1568
    %v1718 = vmul.f32 %v1571, %v1571
    %v1719 = vmul.f32 %v1573, %v1573
    %v1720 = vmul.f32 %v1576, %v1576
    %v1721 = vmul.f32 %v1578, %v1578
    %v1722 = vmul.f32 %v1581, %v1581
    %v1723 = vmul.f32 %v1583, %v1583
    %v1724 = vmul.f32 %v1586, %v1586
    %v1725 = vmul.f32 %v1588, %v1588
    %v1726 = vadd.f32 %v1662, %v1663
    %v1727 = vadd.f32 %v1726, %v1664
    %v1728 = vadd.f32 %v1727, %v1665
    %v1729 = vadd.f32 %v1728, %v1666
    %v1730 = vadd.f32 %v1729, %v1667
    %v1731 = vadd.f32 %v1730, %v1668
    %v1732 = vadd.f32 %v1731, %v1669
    %v1733 = vadd.f32 %v1732, %v1670
    %v1734 = vadd.f32 %v1733, %v1671
    %v1735 = vadd.f32 %v1734, %v1672
    %v1736 = vadd.f32 %v1735, %v1673
    %v1737 = vadd.f32 %v1736, %v1674
    %v1738 = vadd.f32 %v1737, %v1675
    %v1739 = vadd.f32 %v1738, %v1676
    %v1740 = vadd.f32 %v1739, %v1677
    %v1741 = vadd.f32 %v1740, %v1678
    %v1742 = vadd.f32 %v1741, %v1679
    %v1743 = vadd.f32 %v1742, %v1680
    %v1744 = vadd.f32 %v1743, %v1681
    %v1745 = vadd.f32 %v1744, %v1682
    %v1746 = vadd.f32 %v1745, %v1683
    %v1747 = vadd.f32 %v1746, %v1684
    %v1748 = vadd.f32 %v1747, %v1685
    %v1749 = vadd.f32 %v1748, %v1686
    %v1750 = vadd.f32 %v1749, %v1687
    %v1751 = vadd.f32 %v1750, %v1688
    %v1752 = vadd.f32 %v1751, %v1689
    %v1753 = vadd.f32 %v1752, %v1690
    %v1754 = vadd.f32 %v1753, %v1691
    %v1755 = vadd.f32 %v1754, %v1692
    %v1756 = vadd.f32 %v1755, %v1693
    %v1757 = vadd.f32 %v1756, %v1694
    %v1758 = vadd.f32 %v1757, %v1695
    %v1759 = vadd.f32 %v1758, %v1696
    %v1760 = vadd.f32 %v1759, %v1697
    %v1761 = vadd.f32 %v1760, %v1698
    %v1762 = vadd.f32 %v1761, %v1699
    %v1763 = vadd.f32 %v1762, %v1700
    %v1764 = vadd.f32 %v1763, %v1701
    %v1765 = vadd.f32 %v1764, %v1702
    %v1766 = vadd.f32 %v1765, %v1703
    %v1767 = vadd.f32 %v1766, %v1704
    %v1768 = vadd.f32 %v1767, %v1705
    %v1769 = vadd.f32 %v1768, %v1706
    %v1770 = vadd.f32 %v1769, %v1707
    %v1771 = vadd.f32 %v1770, %v1708
    %v1772 = vadd.f32 %v1771, %v1709
    %v1773 = vadd.f32 %v1772, %v1710
    %v1774 = vadd.f32 %v1773, %v1711
    %v1775 = vadd.f32 %v1774, %v1712
    %v1776 = vadd.f32 %v1775, %v1713
    %v1777 = vadd.f32 %v1776, %v1714
    %v1778 = vadd.f32 %v1777, %v1715
    %v1779 = vadd.f32 %v1778, %v1716
    %v1780 = vadd.f32 %v1779, %v1717
    %v1781 = vadd.f32 %v1780, %v1718
    %v1782 = vadd.f32 %v1781, %v1719
    %v1783 = vadd.f32 %v1782, %v1720
    %v1784 = vadd.f32 %v1783, %v1721
    %v1785 = vadd.f32 %v1784, %v1722
    %v1786 = vadd.f32 %v1785, %v1723
    %v1787 = vadd.f32 %v1786, %v1724
    %v1788 = vadd.f32 %v1787, %v1725
    %v1789 = vrot.slane %v1788, 4
    %v1790 = vadd.f32 %v1788, %v1789
    %v1791 = vrot.slane %v1790, 2
    %v1792 = vadd.f32 %v1790, %v1791
    %v1793 = vrot.slane %v1792, 1
    %v1794 = vadd.f32 %v1792, %v1793
    %v1795 = vmul.f32 %v1794, 0.001953125
    %v1796 = vmul.f32 %v1661, %v1661
    %v1797 = vsub.f32 %v1795, %v1796
    %v1798 = vadd.f32 %v1797, 1e-05
    %v1799 = vrsqrt.pop %v1798
    %v1800 = vmul.f32 %v1799, %v1798
    %v1801 = vmul.f32 %v1800, %v1799
    %v1802 = vmul.f32 0.5, %v1801
    %v1803 = vsub.f32 1.5, %v1802
    %v1804 = vmul.f32 %v1799, %v1803
    %vm1805 = vweird.f32 %v1798
    %vm1806 = vweird.f32 %v1799
    %vm1807 = vmor %vm1805, %vm1806
    %v1808 = vsel %vm1807, %v1799, %v1804
    %v1809 = vmul.f32 %v1590, %v1808
    %v1810 = vmul.f32 %v1661, %v1809
    %v1811 = vsub.f32 %v1591, %v1810
    %v1813 = vperm.slane %v1809, 0
    %v1815 = vmul.f32 %v1431, %v1813
    %v1816 = vmul.f32 %v1433, %v1813
    %v1817 = vmul.f32 %v1436, %v1813
    %v1818 = vmul.f32 %v1438, %v1813
    %v1819 = vmul.f32 %v1441, %v1813
    %v1820 = vmul.f32 %v1443, %v1813
    %v1821 = vmul.f32 %v1446, %v1813
    %v1822 = vmul.f32 %v1448, %v1813
    %v1823 = vmul.f32 %v1451, %v1813
    %v1824 = vmul.f32 %v1453, %v1813
    %v1825 = vmul.f32 %v1456, %v1813
    %v1826 = vmul.f32 %v1458, %v1813
    %v1827 = vmul.f32 %v1461, %v1813
    %v1828 = vmul.f32 %v1463, %v1813
    %v1829 = vmul.f32 %v1466, %v1813
    %v1830 = vmul.f32 %v1468, %v1813
    %v1831 = vmul.f32 %v1471, %v1813
    %v1832 = vmul.f32 %v1473, %v1813
    %v1833 = vmul.f32 %v1476, %v1813
    %v1834 = vmul.f32 %v1478, %v1813
    %v1835 = vmul.f32 %v1481, %v1813
    %v1836 = vmul.f32 %v1483, %v1813
    %v1837 = vmul.f32 %v1486, %v1813
    %v1838 = vmul.f32 %v1488, %v1813
    %v1839 = vmul.f32 %v1491, %v1813
    %v1840 = vmul.f32 %v1493, %v1813
    %v1841 = vmul.f32 %v1496, %v1813
    %v1842 = vmul.f32 %v1498, %v1813
    %v1843 = vmul.f32 %v1501, %v1813
    %v1844 = vmul.f32 %v1503, %v1813
    %v1845 = vmul.f32 %v1506, %v1813
    %v1846 = vmul.f32 %v1508, %v1813
    %v1847 = vmul.f32 %v1511, %v1813
    %v1848 = vmul.f32 %v1513, %v1813
    %v1849 = vmul.f32 %v1516, %v1813
    %v1850 = vmul.f32 %v1518, %v1813
    %v1851 = vmul.f32 %v1521, %v1813
    %v1852 = vmul.f32 %v1523, %v1813
    %v1853 = vmul.f32 %v1526, %v1813
    %v1854 = vmul.f32 %v1528, %v1813
    %v1855 = vmul.f32 %v1531, %v1813
    %v1856 = vmul.f32 %v1533, %v1813
    %v1857 = vmul.f32 %v1536, %v1813
    %v1858 = vmul.f32 %v1538, %v1813
    %v1859 = vmul.f32 %v1541, %v1813
    %v1860 = vmul.f32 %v1543, %v1813
    %v1861 = vmul.f32 %v1546, %v1813
    %v1862 = vmul.f32 %v1548, %v1813
    %v1863 = vmul.f32 %v1551, %v1813
    %v1864 = vmul.f32 %v1553, %v1813
    %v1865 = vmul.f32 %v1556, %v1813
    %v1866 = vmul.f32 %v1558, %v1813
    %v1867 = vmul.f32 %v1561, %v1813
    %v1868 = vmul.f32 %v1563, %v1813
    %v1869 = vmul.f32 %v1566, %v1813
    %v1870 = vmul.f32 %v1568, %v1813
    %v1871 = vmul.f32 %v1571, %v1813
    %v1872 = vmul.f32 %v1573, %v1813
    %v1873 = vmul.f32 %v1576, %v1813
    %v1874 = vmul.f32 %v1578, %v1813
    %v1875 = vmul.f32 %v1581, %v1813
    %v1876 = vmul.f32 %v1583, %v1813
    %v1877 = vmul.f32 %v1586, %v1813
    %v1878 = vmul.f32 %v1588, %v1813
    %v1880 = vperm.slane %v1811, 0
    %v1882 = vadd.f32 %v1815, %v1880
    %v1883 = vadd.f32 %v1816, %v1880
    %v1884 = vadd.f32 %v1817, %v1880
    %v1885 = vadd.f32 %v1818, %v1880
    %v1886 = vadd.f32 %v1819, %v1880
    %v1887 = vadd.f32 %v1820, %v1880
    %v1888 = vadd.f32 %v1821, %v1880
    %v1889 = vadd.f32 %v1822, %v1880
    %v1890 = vadd.f32 %v1823, %v1880
    %v1891 = vadd.f32 %v1824, %v1880
    %v1892 = vadd.f32 %v1825, %v1880
    %v1893 = vadd.f32 %v1826, %v1880
    %v1894 = vadd.f32 %v1827, %v1880
    %v1895 = vadd.f32 %v1828, %v1880
    %v1896 = vadd.f32 %v1829, %v1880
    %v1897 = vadd.f32 %v1830, %v1880
    %v1898 = vadd.f32 %v1831, %v1880
    %v1899 = vadd.f32 %v1832, %v1880
    %v1900 = vadd.f32 %v1833, %v1880
    %v1901 = vadd.f32 %v1834, %v1880
    %v1902 = vadd.f32 %v1835, %v1880
    %v1903 = vadd.f32 %v1836, %v1880
    %v1904 = vadd.f32 %v1837, %v1880
    %v1905 = vadd.f32 %v1838, %v1880
    %v1906 = vadd.f32 %v1839, %v1880
    %v1907 = vadd.f32 %v1840, %v1880
    %v1908 = vadd.f32 %v1841, %v1880
    %v1909 = vadd.f32 %v1842, %v1880
    %v1910 = vadd.f32 %v1843, %v1880
    %v1911 = vadd.f32 %v1844, %v1880
    %v1912 = vadd.f32 %v1845, %v1880
    %v1913 = vadd.f32 %v1846, %v1880
    %v1914 = vadd.f32 %v1847, %v1880
    %v1915 = vadd.f32 %v1848, %v1880
    %v1916 = vadd.f32 %v1849, %v1880
    %v1917 = vadd.f32 %v1850, %v1880
    %v1918 = vadd.f32 %v1851, %v1880
    %v1919 = vadd.f32 %v1852, %v1880
    %v1920 = vadd.f32 %v1853, %v1880
    %v1921 = vadd.f32 %v1854, %v1880
    %v1922 = vadd.f32 %v1855, %v1880
    %v1923 = vadd.f32 %v1856, %v1880
    %v1924 = vadd.f32 %v1857, %v1880
    %v1925 = vadd.f32 %v1858, %v1880
    %v1926 = vadd.f32 %v1859, %v1880
    %v1927 = vadd.f32 %v1860, %v1880
    %v1928 = vadd.f32 %v1861, %v1880
    %v1929 = vadd.f32 %v1862, %v1880
    %v1930 = vadd.f32 %v1863, %v1880
    %v1931 = vadd.f32 %v1864, %v1880
    %v1932 = vadd.f32 %v1865, %v1880
    %v1933 = vadd.f32 %v1866, %v1880
    %v1934 = vadd.f32 %v1867, %v1880
    %v1935 = vadd.f32 %v1868, %v1880
    %v1936 = vadd.f32 %v1869, %v1880
    %v1937 = vadd.f32 %v1870, %v1880
    %v1938 = vadd.f32 %v1871, %v1880
    %v1939 = vadd.f32 %v1872, %v1880
    %v1940 = vadd.f32 %v1873, %v1880
    %v1941 = vadd.f32 %v1874, %v1880
    %v1942 = vadd.f32 %v1875, %v1880
    %v1943 = vadd.f32 %v1876, %v1880
    %v1944 = vadd.f32 %v1877, %v1880
    %v1945 = vadd.f32 %v1878, %v1880
    %1946 = vst [vmem:[#allocation4] sm:$0xff] %v1882
    %1947 = vst [vmem:[#allocation4 + $0x8] sm:$0xff] %v1883
    %1948 = vst [vmem:[#allocation4 + $0x10] sm:$0xff] %v1884
    %1949 = vst [vmem:[#allocation4 + $0x18] sm:$0xff] %v1885
    %1950 = vst [vmem:[#allocation4 + $0x20] sm:$0xff] %v1886
    %1951 = vst [vmem:[#allocation4 + $0x28] sm:$0xff] %v1887
    %1952 = vst [vmem:[#allocation4 + $0x30] sm:$0xff] %v1888
    %1953 = vst [vmem:[#allocation4 + $0x38] sm:$0xff] %v1889
    %1954 = vst [vmem:[#allocation4 + $0x40] sm:$0xff] %v1890
    %1955 = vst [vmem:[#allocation4 + $0x48] sm:$0xff] %v1891
    %1956 = vst [vmem:[#allocation4 + $0x50] sm:$0xff] %v1892
    %1957 = vst [vmem:[#allocation4 + $0x58] sm:$0xff] %v1893
    %1958 = vst [vmem:[#allocation4 + $0x60] sm:$0xff] %v1894
    %1959 = vst [vmem:[#allocation4 + $0x68] sm:$0xff] %v1895
    %1960 = vst [vmem:[#allocation4 + $0x70] sm:$0xff] %v1896
    %1961 = vst [vmem:[#allocation4 + $0x78] sm:$0xff] %v1897
    %1962 = vst [vmem:[#allocation4 + $0x80] sm:$0xff] %v1898
    %1963 = vst [vmem:[#allocation4 + $0x88] sm:$0xff] %v1899
    %1964 = vst [vmem:[#allocation4 + $0x90] sm:$0xff] %v1900
    %1965 = vst [vmem:[#allocation4 + $0x98] sm:$0xff] %v1901
    %1966 = vst [vmem:[#allocation4 + $0xa0] sm:$0xff] %v1902
    %1967 = vst [vmem:[#allocation4 + $0xa8] sm:$0xff] %v1903
    %1968 = vst [vmem:[#allocation4 + $0xb0] sm:$0xff] %v1904
    %1969 = vst [vmem:[#allocation4 + $0xb8] sm:$0xff] %v1905
    %1970 = vst [vmem:[#allocation4 + $0xc0] sm:$0xff] %v1906
    %1971 = vst [vmem:[#allocation4 + $0xc8] sm:$0xff] %v1907
    %1972 = vst [vmem:[#allocation4 + $0xd0] sm:$0xff] %v1908
    %1973 = vst [vmem:[#allocation4 + $0xd8] sm:$0xff] %v1909
    %1974 = vst [vmem:[#allocation4 + $0xe0] sm:$0xff] %v1910
    %1975 = vst [vmem:[#allocation4 + $0xe8] sm:$0xff] %v1911
    %1976 = vst [vmem:[#allocation4 + $0xf0] sm:$0xff] %v1912
    %1977 = vst [vmem:[#allocation4 + $0xf8] sm:$0xff] %v1913
    %1978 = vst [vmem:[#allocation4 + $0x100] sm:$0xff] %v1914
    %1979 = vst [vmem:[#allocation4 + $0x108] sm:$0xff] %v1915
    %1980 = vst [vmem:[#allocation4 + $0x110] sm:$0xff] %v1916
    %1981 = vst [vmem:[#allocation4 + $0x118] sm:$0xff] %v1917
    %1982 = vst [vmem:[#allocation4 + $0x120] sm:$0xff] %v1918
    %1983 = vst [vmem:[#allocation4 + $0x128] sm:$0xff] %v1919
    %1984 = vst [vmem:[#allocation4 + $0x130] sm:$0xff] %v1920
    %1985 = vst [vmem:[#allocation4 + $0x138] sm:$0xff] %v1921
    %1986 = vst [vmem:[#allocation4 + $0x140] sm:$0xff] %v1922
    %1987 = vst [vmem:[#allocation4 + $0x148] sm:$0xff] %v1923
    %1988 = vst [vmem:[#allocation4 + $0x150] sm:$0xff] %v1924
    %1989 = vst [vmem:[#allocation4 + $0x158] sm:$0xff] %v1925
    %1990 = vst [vmem:[#allocation4 + $0x160] sm:$0xff] %v1926
    %1991 = vst [vmem:[#allocation4 + $0x168] sm:$0xff] %v1927
    %1992 = vst [vmem:[#allocation4 + $0x170] sm:$0xff] %v1928
    %1993 = vst [vmem:[#allocation4 + $0x178] sm:$0xff] %v1929
    %1994 = vst [vmem:[#allocation4 + $0x180] sm:$0xff] %v1930
    %1995 = vst [vmem:[#allocation4 + $0x188] sm:$0xff] %v1931
    %1996 = vst [vmem:[#allocation4 + $0x190] sm:$0xff] %v1932
    %1997 = vst [vmem:[#allocation4 + $0x198] sm:$0xff] %v1933
    %1998 = vst [vmem:[#allocation4 + $0x1a0] sm:$0xff] %v1934
    %1999 = vst [vmem:[#allocation4 + $0x1a8] sm:$0xff] %v1935
    %2000 = vst [vmem:[#allocation4 + $0x1b0] sm:$0xff] %v1936
    %2001 = vst [vmem:[#allocation4 + $0x1b8] sm:$0xff] %v1937
    %2002 = vst [vmem:[#allocation4 + $0x1c0] sm:$0xff] %v1938
    %2003 = vst [vmem:[#allocation4 + $0x1c8] sm:$0xff] %v1939
    %2004 = vst [vmem:[#allocation4 + $0x1d0] sm:$0xff] %v1940
    %2005 = vst [vmem:[#allocation4 + $0x1d8] sm:$0xff] %v1941
    %2006 = vst [vmem:[#allocation4 + $0x1e0] sm:$0xff] %v1942
    %2007 = vst [vmem:[#allocation4 + $0x1e8] sm:$0xff] %v1943
    %2008 = vst [vmem:[#allocation4 + $0x1f0] sm:$0xff] %v1944
    %2009 = vst [vmem:[#allocation4 + $0x1f8] sm:$0xff] %v1945
    // Predicated region
    $region34: #{tpu_custom_call.1} parent=1 // pred_check
      _
    $region35: #{tpu_custom_call.1} parent=1 // pred_check_branch
      %2011 = sbr.rel (0) target = $region37
    $region36: #{tpu_custom_call.1} parent=1 // pred_region
      %2013 = vsyncadd [#allocation3], 0
      %s2014 = sshll.u32 [#allocation2], 4
      %s2015 = int_to_ptr.vmem [resolvable:$true] %s2014
      %s2016 = sshll.u32 %s8, 4
      %s2017 = int_to_ptr.hbm [resolvable:$true] %s2016
      %2022 = dma.vmem_to_hbm [thread:$0]  %s2015, 4096, %s2017, [#allocation3], 64, 64, 4
    $region37: #{tpu_custom_call.1} parent=1 // pred_fallthru
      _
    // Predicated region
    $region38: #{tpu_custom_call.1} parent=1 // pred_check
      _
    $region39: #{tpu_custom_call.1} parent=1 // pred_check_branch
      %2024 = sbr.rel (0) target = $region41
    $region40: #{tpu_custom_call.1} parent=1 // pred_region
      %2026 = vsyncadd [#allocation5], 0
      %s2027 = sshll.u32 [#allocation4], 4
      %s2028 = int_to_ptr.vmem [resolvable:$true] %s2027
      %s2029 = sshll.u32 %s9, 4
      %s2030 = int_to_ptr.hbm [resolvable:$true] %s2029
      %2035 = dma.vmem_to_hbm [thread:$0]  %s2028, 8192, %s2030, [#allocation5], 128, 128, 8
    $region41: #{tpu_custom_call.1} parent=1 // pred_fallthru
      _
    // Predicated region
    $region42: #{tpu_custom_call.1} parent=1 // pred_check
      _
    $region43: #{tpu_custom_call.1} parent=1 // pred_check_branch
      %2037 = sbr.rel (0) target = $region45
    $region44: #{tpu_custom_call.1} parent=1 // pred_region
      %2039 = dma.done [#allocation3], 4096
    $region45: #{tpu_custom_call.1} parent=1 // pred_fallthru
      _
    // Predicated region
    $region46: #{tpu_custom_call.1} parent=1 // pred_check
      _
    $region47: #{tpu_custom_call.1} parent=1 // pred_check_branch
      %2041 = sbr.rel (0) target = $region49
    $region48: #{tpu_custom_call.1} parent=1 // pred_region
      %2043 = dma.done [#allocation5], 8192
    $region49: #{tpu_custom_call.1} parent=1 // pred_fallthru
      _
    %2044 = vsyncpa [#allocation3], 1
    %2045 = vsyncpa [#allocation5], 1

</llo_original>
